<compile_context>
chip_gen: v7x
topology: tpu7x:2x2x1
jax: 0.10.0
libtpu: 0.0.40
codegen_flags: <defaults>
</compile_context>

<pallas_src>
import functools

import jax
import jax.numpy as jnp
from jax import lax
from jax.experimental import pallas as pl
from jax.experimental.pallas import tpu as pltpu

KSIZE = 7
PAD = 3


def _round_up(v, m):
    return (v + m - 1) // m * m


def _spatial_attention_kernel(w_ref, x_ref, o_ref, feat_ref, *, H, W, row_band):
    # w_ref   : SMEM (2*49,) f32 -- [avg-plane weights pre-scaled by 1/C,
    #           max-plane weights], row-major over (kh, kw).
    # x_ref   : VMEM (bt, c_chunk, H, W) -- unpadded input chunk.
    # o_ref   : VMEM (bt, 1, H, W)       -- attention map (written at last chunk).
    # feat_ref: VMEM (bt, 2, HP8, WP128) f32 scratch -- zero-padded (sum, max)
    #           planes, persistent across the channel-chunk grid axis.
    bt = x_ref.shape[0]
    n_chunks = pl.num_programs(1)
    c_idx = pl.program_id(1)
    wp = feat_ref.shape[-1]

    # ---- (re)zero the padded feature scratch at the first channel chunk ----
    @pl.when(c_idx == 0)
    def _init():
        feat_ref[...] = jnp.zeros_like(feat_ref)

    # ---- channel reduction for this chunk (pure VALU, f32 accumulation) ----
    for i in range(bt):
        x = x_ref[i].astype(jnp.float32)               # (c_chunk, H, W)
        part_sum = jnp.sum(x, axis=0)                  # (H, W)
        part_max = jnp.max(x, axis=0)                  # (H, W)

        @pl.when(c_idx == 0)
        def _first(i=i, s=part_sum, m=part_max):
            feat_ref[i, 0, PAD:PAD + H, PAD:PAD + W] = s
            feat_ref[i, 1, PAD:PAD + H, PAD:PAD + W] = m

        @pl.when(c_idx > 0)
        def _accum(i=i, s=part_sum, m=part_max):
            feat_ref[i, 0, PAD:PAD + H, PAD:PAD + W] += s
            feat_ref[i, 1, PAD:PAD + H, PAD:PAD + W] = jnp.maximum(
                feat_ref[i, 1, PAD:PAD + H, PAD:PAD + W], m)

    # ---- last chunk: factored 7x7 conv (2 planes -> 1) + sigmoid ----
    @pl.when(c_idx == n_chunks - 1)
    def _conv():
        wv = [w_ref[k] for k in range(2 * KSIZE * KSIZE)]   # scalars from SMEM
        for i in range(bt):
            for r0 in range(0, H, row_band):
                hb = min(row_band, H - r0)
                # Per-kw column accumulators over the full padded lane width.
                col = [jnp.zeros((hb, wp), jnp.float32) for _ in range(KSIZE)]
                for p in range(2):
                    for kh in range(KSIZE):
                        # One row-shifted (sublane) read per (plane, kh): 14 total.
                        row = feat_ref[i, p, r0 + kh:r0 + kh + hb, :]
                        for kw in range(KSIZE):
                            w = wv[p * KSIZE * KSIZE + kh * KSIZE + kw]
                            col[kw] = col[kw] + w * row
                # Apply each kw lane shift exactly once (7 shifts, not 98).
                out_acc = col[0][:, 0:W]
                for kw in range(1, KSIZE):
                    out_acc = out_acc + col[kw][:, kw:kw + W]
                o_ref[i, 0, r0:r0 + hb, :] = jax.nn.sigmoid(out_acc).astype(
                    o_ref.dtype)


def spatial_attention(x, weight, *, c_chunk=None, batch_tile=None):
    """x: (B, C, H, W); weight: (1, 2, 7, 7) Conv2d weight (no bias).

    Returns sigmoid(conv2d(cat[mean_c(x), max_c(x)], weight, pad=3)): (B,1,H,W).
    """
    B, C, H, W = x.shape
    assert weight.shape == (1, 2, KSIZE, KSIZE)

    # Fold 1/C of the channel mean into the avg-plane weights (kernel uses sum).
    w_avg = (weight[0, 0].astype(jnp.float32) / C).reshape(-1)
    w_max = weight[0, 1].astype(jnp.float32).reshape(-1)
    w_flat = jnp.concatenate([w_avg, w_max])            # (98,)

    esize = x.dtype.itemsize
    # Channel-chunk size: keep the per-step input block <= ~2 MiB and <= 256
    # channels so double-buffered DMA fits scoped VMEM on all generations
    # (v7x has the smallest VMEM, v5e the smallest default scoped limit).
    if c_chunk is None:
        c_chunk = max(1, min(C, 256, (2 * 1024 * 1024) // max(1, H * W * esize)))
    c_chunk = max(1, min(c_chunk, C))
    while C % c_chunk:
        c_chunk -= 1
    n_chunks = C // c_chunk

    # Batch tile: amortize per-grid-step overhead when B is large, but keep at
    # least 2 steps on the parallel batch axis when B >= 2 (v7x has 2 cores).
    if batch_tile is None:
        vmem_cap = max(1, (2 * 1024 * 1024) // max(1, c_chunk * H * W * esize))
        batch_tile = max(1, min(8, B // 2 if B >= 2 else 1, vmem_cap))
    batch_tile = max(1, min(batch_tile, B))
    while B % batch_tile:
        batch_tile -= 1
    n_btiles = B // batch_tile

    HP8 = _round_up(H + 2 * PAD, 8)        # padded feature rows (sublane-aligned)
    WP128 = _round_up(W + 2 * PAD, 128)    # padded feature cols (lane-aligned)

    kernel = functools.partial(_spatial_attention_kernel, H=H, W=W, row_band=32)

    return pl.pallas_call(
        kernel,
        out_shape=jax.ShapeDtypeStruct((B, 1, H, W), x.dtype),
        grid=(n_btiles, n_chunks),
        in_specs=[
            pl.BlockSpec(memory_space=pltpu.MemorySpace.SMEM),                  # weights
            pl.BlockSpec((batch_tile, c_chunk, H, W), lambda b, c: (b, c, 0, 0)),  # x
        ],
        out_specs=pl.BlockSpec((batch_tile, 1, H, W), lambda b, c: (b, 0, 0, 0)),
        scratch_shapes=[pltpu.VMEM((batch_tile, 2, HP8, WP128), jnp.float32)],
        compiler_params=pltpu.CompilerParams(
            dimension_semantics=("parallel", "arbitrary")),
    )(w_flat, x)


def _reference(x, weight):
    avg = jnp.mean(x, axis=1, keepdims=True)
    mx = jnp.max(x, axis=1, keepdims=True)
    feat = jnp.concatenate([avg, mx], axis=1)           # (B, 2, H, W)
    y = lax.conv_general_dilated(
        feat, weight,
        window_strides=(1, 1),
        padding=((PAD, PAD), (PAD, PAD)),
        dimension_numbers=("NCHW", "OIHW", "NCHW"),
    )
    return jax.nn.sigmoid(y)


if __name__ == "__main__":
    key = jax.random.PRNGKey(0)
    kx, kw = jax.random.split(key)

    B, C, H, W = 2, 4, 16, 16
    x = jax.random.normal(kx, (B, C, H, W), dtype=jnp.float32)

    # Deterministic Conv2d(2, 1, 7, bias=False) weight init (kaiming-uniform-ish).
    fan_in = 2 * KSIZE * KSIZE
    bound = 1.0 / (fan_in ** 0.5)
    weight = jax.random.uniform(
        kw, (1, 2, KSIZE, KSIZE), minval=-bound, maxval=bound, dtype=jnp.float32)

    out = spatial_attention(x, weight)
    out = jax.block_until_ready(out)

    ref = _reference(x, weight)
    assert out.shape == (B, 1, H, W)
    assert jnp.allclose(out, ref, atol=2e-5, rtol=2e-5), (
        float(jnp.max(jnp.abs(out - ref))))

    print("KERNEL_OK")
</pallas_src>

<mosaic_0001>
module attributes {stable_mosaic.version = 11 : i64} {
  func.func @_spatial_attention_kernel(%arg0: i32, %arg1: i32, %arg2: memref<98xf32, #tpu.memory_space<smem>>, %arg3: memref<1x4x16x16xf32, #tpu.memory_space<vmem>>, %arg4: memref<1x1x16x16xf32, #tpu.memory_space<vmem>>, %arg5: memref<1x2x24x128xf32, #tpu.memory_space<vmem>>) attributes {dimension_semantics = [#tpu.dimension_semantics<parallel>, #tpu.dimension_semantics<arbitrary>], iteration_bounds = array<i64: 2, 1>, scalar_prefetch = 0 : i64, scratch_operands = 1 : i64, tpu.core_type = #tpu.core_type<tc>, window_params = [{transform_indices = @transform_0, window_bounds = array<i64: 98>}, {transform_indices = @transform_1, window_bounds = array<i64: 1, 4, 16, 16>}, {transform_indices = @transform_2, window_bounds = array<i64: 1, 1, 16, 16>}]} {
    %c0_i32 = arith.constant 0 : i32
    %0 = arith.cmpi eq, %arg1, %c0_i32 : i32
    %1 = arith.extui %0 : i1 to i32
    %c0_i32_0 = arith.constant 0 : i32
    %2 = arith.cmpi ne, %1, %c0_i32_0 : i32
    scf.if %2 {
      %cst_11 = arith.constant 0.000000e+00 : f32
      %16 = vector.broadcast %cst_11 : f32 to vector<1x2x24x128xf32>
      %c0_12 = arith.constant 0 : index
      %c0_13 = arith.constant 0 : index
      %c0_14 = arith.constant 0 : index
      %c0_15 = arith.constant 0 : index
      %17 = vector.load %arg5[%c0_12, %c0_13, %c0_14, %c0_15] : memref<1x2x24x128xf32, #tpu.memory_space<vmem>>, vector<1x2x24x128xf32>
      tpu.vector_store %arg5[%c0_12, %c0_13, %c0_14, %c0_15], %16 {strides = array<i32>} : memref<1x2x24x128xf32, #tpu.memory_space<vmem>>, vector<1x2x24x128xf32>,
    } else {
    }
    %c0 = arith.constant 0 : index
    %c0_1 = arith.constant 0 : index
    %c0_2 = arith.constant 0 : index
    %c0_3 = arith.constant 0 : index
    %3 = vector.load %arg3[%c0, %c0_1, %c0_2, %c0_3] : memref<1x4x16x16xf32, #tpu.memory_space<vmem>>, vector<1x4x16x16xf32>
    %4 = vector.shape_cast %3 : vector<1x4x16x16xf32> to vector<4x16x16xf32>
    %cst = arith.constant dense<0.000000e+00> : vector<16x16xf32>
    %5 = vector.multi_reduction <add>, %4, %cst [0] : vector<4x16x16xf32> to vector<16x16xf32>
    %cst_4 = arith.constant dense<0xFF800000> : vector<16x16xf32>
    %6 = vector.multi_reduction <maximumf>, %4, %cst_4 [0] : vector<4x16x16xf32> to vector<16x16xf32>
    %c0_i32_5 = arith.constant 0 : i32
    %7 = arith.cmpi eq, %arg1, %c0_i32_5 : i32
    %8 = arith.extui %7 : i1 to i32
    %c0_i32_6 = arith.constant 0 : i32
    %9 = arith.cmpi ne, %8, %c0_i32_6 : i32
    scf.if %9 {
      %c0_11 = arith.constant 0 : index
      %c0_12 = arith.constant 0 : index
      %c3 = arith.constant 3 : index
      %c3_13 = arith.constant 3 : index
      %16 = vector.load %arg5[%c0_11, %c0_12, %c3, %c3_13] : memref<1x2x24x128xf32, #tpu.memory_space<vmem>>, vector<1x1x16x16xf32>
      %17 = vector.shape_cast %16 : vector<1x1x16x16xf32> to vector<16x16xf32>
      %18 = vector.shape_cast %5 : vector<16x16xf32> to vector<1x1x16x16xf32>
      tpu.vector_store %arg5[%c0_11, %c0_12, %c3, %c3_13], %18 {strides = array<i32>} : memref<1x2x24x128xf32, #tpu.memory_space<vmem>>, vector<1x1x16x16xf32>,
      %c0_14 = arith.constant 0 : index
      %c1 = arith.constant 1 : index
      %c3_15 = arith.constant 3 : index
      %c3_16 = arith.constant 3 : index
      %19 = vector.load %arg5[%c0_14, %c1, %c3_15, %c3_16] : memref<1x2x24x128xf32, #tpu.memory_space<vmem>>, vector<1x1x16x16xf32>
      %20 = vector.shape_cast %19 : vector<1x1x16x16xf32> to vector<16x16xf32>
      %21 = vector.shape_cast %6 : vector<16x16xf32> to vector<1x1x16x16xf32>
      tpu.vector_store %arg5[%c0_14, %c1, %c3_15, %c3_16], %21 {strides = array<i32>} : memref<1x2x24x128xf32, #tpu.memory_space<vmem>>, vector<1x1x16x16xf32>,
    } else {
    }
    %c0_i32_7 = arith.constant 0 : i32
    %10 = arith.cmpi sgt, %arg1, %c0_i32_7 : i32
    %11 = arith.extui %10 : i1 to i32
    %c0_i32_8 = arith.constant 0 : i32
    %12 = arith.cmpi ne, %11, %c0_i32_8 : i32
    scf.if %12 {
      %c0_11 = arith.constant 0 : index
      %c0_12 = arith.constant 0 : index
      %c3 = arith.constant 3 : index
      %c3_13 = arith.constant 3 : index
      %16 = vector.load %arg5[%c0_11, %c0_12, %c3, %c3_13] : memref<1x2x24x128xf32, #tpu.memory_space<vmem>>, vector<1x1x16x16xf32>
      %17 = vector.shape_cast %16 : vector<1x1x16x16xf32> to vector<16x16xf32>
      %18 = arith.addf %17, %5 : vector<16x16xf32>
      %c0_14 = arith.constant 0 : index
      %c0_15 = arith.constant 0 : index
      %c3_16 = arith.constant 3 : index
      %c3_17 = arith.constant 3 : index
      %19 = vector.load %arg5[%c0_14, %c0_15, %c3_16, %c3_17] : memref<1x2x24x128xf32, #tpu.memory_space<vmem>>, vector<1x1x16x16xf32>
      %20 = vector.shape_cast %19 : vector<1x1x16x16xf32> to vector<16x16xf32>
      %21 = vector.shape_cast %18 : vector<16x16xf32> to vector<1x1x16x16xf32>
      tpu.vector_store %arg5[%c0_14, %c0_15, %c3_16, %c3_17], %21 {strides = array<i32>} : memref<1x2x24x128xf32, #tpu.memory_space<vmem>>, vector<1x1x16x16xf32>,
      %c0_18 = arith.constant 0 : index
      %c1 = arith.constant 1 : index
      %c3_19 = arith.constant 3 : index
      %c3_20 = arith.constant 3 : index
      %22 = vector.load %arg5[%c0_18, %c1, %c3_19, %c3_20] : memref<1x2x24x128xf32, #tpu.memory_space<vmem>>, vector<1x1x16x16xf32>
      %23 = vector.shape_cast %22 : vector<1x1x16x16xf32> to vector<16x16xf32>
      %24 = arith.maximumf %23, %6 : vector<16x16xf32>
      %c0_21 = arith.constant 0 : index
      %c1_22 = arith.constant 1 : index
      %c3_23 = arith.constant 3 : index
      %c3_24 = arith.constant 3 : index
      %25 = vector.load %arg5[%c0_21, %c1_22, %c3_23, %c3_24] : memref<1x2x24x128xf32, #tpu.memory_space<vmem>>, vector<1x1x16x16xf32>
      %26 = vector.shape_cast %25 : vector<1x1x16x16xf32> to vector<16x16xf32>
      %27 = vector.shape_cast %24 : vector<16x16xf32> to vector<1x1x16x16xf32>
      tpu.vector_store %arg5[%c0_21, %c1_22, %c3_23, %c3_24], %27 {strides = array<i32>} : memref<1x2x24x128xf32, #tpu.memory_space<vmem>>, vector<1x1x16x16xf32>,
    } else {
    }
    %c0_i32_9 = arith.constant 0 : i32
    %13 = arith.cmpi eq, %arg1, %c0_i32_9 : i32
    %14 = arith.extui %13 : i1 to i32
    %c0_i32_10 = arith.constant 0 : i32
    %15 = arith.cmpi ne, %14, %c0_i32_10 : i32
    scf.if %15 {
      %c0_11 = arith.constant 0 : index
      %16 = memref.load %arg2[%c0_11] : memref<98xf32, #tpu.memory_space<smem>>
      %c1 = arith.constant 1 : index
      %17 = memref.load %arg2[%c1] : memref<98xf32, #tpu.memory_space<smem>>
      %c2 = arith.constant 2 : index
      %18 = memref.load %arg2[%c2] : memref<98xf32, #tpu.memory_space<smem>>
      %c3 = arith.constant 3 : index
      %19 = memref.load %arg2[%c3] : memref<98xf32, #tpu.memory_space<smem>>
      %c4 = arith.constant 4 : index
      %20 = memref.load %arg2[%c4] : memref<98xf32, #tpu.memory_space<smem>>
      %c5 = arith.constant 5 : index
      %21 = memref.load %arg2[%c5] : memref<98xf32, #tpu.memory_space<smem>>
      %c6 = arith.constant 6 : index
      %22 = memref.load %arg2[%c6] : memref<98xf32, #tpu.memory_space<smem>>
      %c7 = arith.constant 7 : index
      %23 = memref.load %arg2[%c7] : memref<98xf32, #tpu.memory_space<smem>>
      %c8 = arith.constant 8 : index
      %24 = memref.load %arg2[%c8] : memref<98xf32, #tpu.memory_space<smem>>
      %c9 = arith.constant 9 : index
      %25 = memref.load %arg2[%c9] : memref<98xf32, #tpu.memory_space<smem>>
      %c10 = arith.constant 10 : index
      %26 = memref.load %arg2[%c10] : memref<98xf32, #tpu.memory_space<smem>>
      %c11 = arith.constant 11 : index
      %27 = memref.load %arg2[%c11] : memref<98xf32, #tpu.memory_space<smem>>
      %c12 = arith.constant 12 : index
      %28 = memref.load %arg2[%c12] : memref<98xf32, #tpu.memory_space<smem>>
      %c13 = arith.constant 13 : index
      %29 = memref.load %arg2[%c13] : memref<98xf32, #tpu.memory_space<smem>>
      %c14 = arith.constant 14 : index
      %30 = memref.load %arg2[%c14] : memref<98xf32, #tpu.memory_space<smem>>
      %c15 = arith.constant 15 : index
      %31 = memref.load %arg2[%c15] : memref<98xf32, #tpu.memory_space<smem>>
      %c16 = arith.constant 16 : index
      %32 = memref.load %arg2[%c16] : memref<98xf32, #tpu.memory_space<smem>>
      %c17 = arith.constant 17 : index
      %33 = memref.load %arg2[%c17] : memref<98xf32, #tpu.memory_space<smem>>
      %c18 = arith.constant 18 : index
      %34 = memref.load %arg2[%c18] : memref<98xf32, #tpu.memory_space<smem>>
      %c19 = arith.constant 19 : index
      %35 = memref.load %arg2[%c19] : memref<98xf32, #tpu.memory_space<smem>>
      %c20 = arith.constant 20 : index
      %36 = memref.load %arg2[%c20] : memref<98xf32, #tpu.memory_space<smem>>
      %c21 = arith.constant 21 : index
      %37 = memref.load %arg2[%c21] : memref<98xf32, #tpu.memory_space<smem>>
      %c22 = arith.constant 22 : index
      %38 = memref.load %arg2[%c22] : memref<98xf32, #tpu.memory_space<smem>>
      %c23 = arith.constant 23 : index
      %39 = memref.load %arg2[%c23] : memref<98xf32, #tpu.memory_space<smem>>
      %c24 = arith.constant 24 : index
      %40 = memref.load %arg2[%c24] : memref<98xf32, #tpu.memory_space<smem>>
      %c25 = arith.constant 25 : index
      %41 = memref.load %arg2[%c25] : memref<98xf32, #tpu.memory_space<smem>>
      %c26 = arith.constant 26 : index
      %42 = memref.load %arg2[%c26] : memref<98xf32, #tpu.memory_space<smem>>
      %c27 = arith.constant 27 : index
      %43 = memref.load %arg2[%c27] : memref<98xf32, #tpu.memory_space<smem>>
      %c28 = arith.constant 28 : index
      %44 = memref.load %arg2[%c28] : memref<98xf32, #tpu.memory_space<smem>>
      %c29 = arith.constant 29 : index
      %45 = memref.load %arg2[%c29] : memref<98xf32, #tpu.memory_space<smem>>
      %c30 = arith.constant 30 : index
      %46 = memref.load %arg2[%c30] : memref<98xf32, #tpu.memory_space<smem>>
      %c31 = arith.constant 31 : index
      %47 = memref.load %arg2[%c31] : memref<98xf32, #tpu.memory_space<smem>>
      %c32 = arith.constant 32 : index
      %48 = memref.load %arg2[%c32] : memref<98xf32, #tpu.memory_space<smem>>
      %c33 = arith.constant 33 : index
      %49 = memref.load %arg2[%c33] : memref<98xf32, #tpu.memory_space<smem>>
      %c34 = arith.constant 34 : index
      %50 = memref.load %arg2[%c34] : memref<98xf32, #tpu.memory_space<smem>>
      %c35 = arith.constant 35 : index
      %51 = memref.load %arg2[%c35] : memref<98xf32, #tpu.memory_space<smem>>
      %c36 = arith.constant 36 : index
      %52 = memref.load %arg2[%c36] : memref<98xf32, #tpu.memory_space<smem>>
      %c37 = arith.constant 37 : index
      %53 = memref.load %arg2[%c37] : memref<98xf32, #tpu.memory_space<smem>>
      %c38 = arith.constant 38 : index
      %54 = memref.load %arg2[%c38] : memref<98xf32, #tpu.memory_space<smem>>
      %c39 = arith.constant 39 : index
      %55 = memref.load %arg2[%c39] : memref<98xf32, #tpu.memory_space<smem>>
      %c40 = arith.constant 40 : index
      %56 = memref.load %arg2[%c40] : memref<98xf32, #tpu.memory_space<smem>>
      %c41 = arith.constant 41 : index
      %57 = memref.load %arg2[%c41] : memref<98xf32, #tpu.memory_space<smem>>
      %c42 = arith.constant 42 : index
      %58 = memref.load %arg2[%c42] : memref<98xf32, #tpu.memory_space<smem>>
      %c43 = arith.constant 43 : index
      %59 = memref.load %arg2[%c43] : memref<98xf32, #tpu.memory_space<smem>>
      %c44 = arith.constant 44 : index
      %60 = memref.load %arg2[%c44] : memref<98xf32, #tpu.memory_space<smem>>
      %c45 = arith.constant 45 : index
      %61 = memref.load %arg2[%c45] : memref<98xf32, #tpu.memory_space<smem>>
      %c46 = arith.constant 46 : index
      %62 = memref.load %arg2[%c46] : memref<98xf32, #tpu.memory_space<smem>>
      %c47 = arith.constant 47 : index
      %63 = memref.load %arg2[%c47] : memref<98xf32, #tpu.memory_space<smem>>
      %c48 = arith.constant 48 : index
      %64 = memref.load %arg2[%c48] : memref<98xf32, #tpu.memory_space<smem>>
      %c49 = arith.constant 49 : index
      %65 = memref.load %arg2[%c49] : memref<98xf32, #tpu.memory_space<smem>>
      %c50 = arith.constant 50 : index
      %66 = memref.load %arg2[%c50] : memref<98xf32, #tpu.memory_space<smem>>
      %c51 = arith.constant 51 : index
      %67 = memref.load %arg2[%c51] : memref<98xf32, #tpu.memory_space<smem>>
      %c52 = arith.constant 52 : index
      %68 = memref.load %arg2[%c52] : memref<98xf32, #tpu.memory_space<smem>>
      %c53 = arith.constant 53 : index
      %69 = memref.load %arg2[%c53] : memref<98xf32, #tpu.memory_space<smem>>
      %c54 = arith.constant 54 : index
      %70 = memref.load %arg2[%c54] : memref<98xf32, #tpu.memory_space<smem>>
      %c55 = arith.constant 55 : index
      %71 = memref.load %arg2[%c55] : memref<98xf32, #tpu.memory_space<smem>>
      %c56 = arith.constant 56 : index
      %72 = memref.load %arg2[%c56] : memref<98xf32, #tpu.memory_space<smem>>
      %c57 = arith.constant 57 : index
      %73 = memref.load %arg2[%c57] : memref<98xf32, #tpu.memory_space<smem>>
      %c58 = arith.constant 58 : index
      %74 = memref.load %arg2[%c58] : memref<98xf32, #tpu.memory_space<smem>>
      %c59 = arith.constant 59 : index
      %75 = memref.load %arg2[%c59] : memref<98xf32, #tpu.memory_space<smem>>
      %c60 = arith.constant 60 : index
      %76 = memref.load %arg2[%c60] : memref<98xf32, #tpu.memory_space<smem>>
      %c61 = arith.constant 61 : index
      %77 = memref.load %arg2[%c61] : memref<98xf32, #tpu.memory_space<smem>>
      %c62 = arith.constant 62 : index
      %78 = memref.load %arg2[%c62] : memref<98xf32, #tpu.memory_space<smem>>
      %c63 = arith.constant 63 : index
      %79 = memref.load %arg2[%c63] : memref<98xf32, #tpu.memory_space<smem>>
      %c64 = arith.constant 64 : index
      %80 = memref.load %arg2[%c64] : memref<98xf32, #tpu.memory_space<smem>>
      %c65 = arith.constant 65 : index
      %81 = memref.load %arg2[%c65] : memref<98xf32, #tpu.memory_space<smem>>
      %c66 = arith.constant 66 : index
      %82 = memref.load %arg2[%c66] : memref<98xf32, #tpu.memory_space<smem>>
      %c67 = arith.constant 67 : index
      %83 = memref.load %arg2[%c67] : memref<98xf32, #tpu.memory_space<smem>>
      %c68 = arith.constant 68 : index
      %84 = memref.load %arg2[%c68] : memref<98xf32, #tpu.memory_space<smem>>
      %c69 = arith.constant 69 : index
      %85 = memref.load %arg2[%c69] : memref<98xf32, #tpu.memory_space<smem>>
      %c70 = arith.constant 70 : index
      %86 = memref.load %arg2[%c70] : memref<98xf32, #tpu.memory_space<smem>>
      %c71 = arith.constant 71 : index
      %87 = memref.load %arg2[%c71] : memref<98xf32, #tpu.memory_space<smem>>
      %c72 = arith.constant 72 : index
      %88 = memref.load %arg2[%c72] : memref<98xf32, #tpu.memory_space<smem>>
      %c73 = arith.constant 73 : index
      %89 = memref.load %arg2[%c73] : memref<98xf32, #tpu.memory_space<smem>>
      %c74 = arith.constant 74 : index
      %90 = memref.load %arg2[%c74] : memref<98xf32, #tpu.memory_space<smem>>
      %c75 = arith.constant 75 : index
      %91 = memref.load %arg2[%c75] : memref<98xf32, #tpu.memory_space<smem>>
      %c76 = arith.constant 76 : index
      %92 = memref.load %arg2[%c76] : memref<98xf32, #tpu.memory_space<smem>>
      %c77 = arith.constant 77 : index
      %93 = memref.load %arg2[%c77] : memref<98xf32, #tpu.memory_space<smem>>
      %c78 = arith.constant 78 : index
      %94 = memref.load %arg2[%c78] : memref<98xf32, #tpu.memory_space<smem>>
      %c79 = arith.constant 79 : index
      %95 = memref.load %arg2[%c79] : memref<98xf32, #tpu.memory_space<smem>>
      %c80 = arith.constant 80 : index
      %96 = memref.load %arg2[%c80] : memref<98xf32, #tpu.memory_space<smem>>
      %c81 = arith.constant 81 : index
      %97 = memref.load %arg2[%c81] : memref<98xf32, #tpu.memory_space<smem>>
      %c82 = arith.constant 82 : index
      %98 = memref.load %arg2[%c82] : memref<98xf32, #tpu.memory_space<smem>>
      %c83 = arith.constant 83 : index
      %99 = memref.load %arg2[%c83] : memref<98xf32, #tpu.memory_space<smem>>
      %c84 = arith.constant 84 : index
      %100 = memref.load %arg2[%c84] : memref<98xf32, #tpu.memory_space<smem>>
      %c85 = arith.constant 85 : index
      %101 = memref.load %arg2[%c85] : memref<98xf32, #tpu.memory_space<smem>>
      %c86 = arith.constant 86 : index
      %102 = memref.load %arg2[%c86] : memref<98xf32, #tpu.memory_space<smem>>
      %c87 = arith.constant 87 : index
      %103 = memref.load %arg2[%c87] : memref<98xf32, #tpu.memory_space<smem>>
      %c88 = arith.constant 88 : index
      %104 = memref.load %arg2[%c88] : memref<98xf32, #tpu.memory_space<smem>>
      %c89 = arith.constant 89 : index
      %105 = memref.load %arg2[%c89] : memref<98xf32, #tpu.memory_space<smem>>
      %c90 = arith.constant 90 : index
      %106 = memref.load %arg2[%c90] : memref<98xf32, #tpu.memory_space<smem>>
      %c91 = arith.constant 91 : index
      %107 = memref.load %arg2[%c91] : memref<98xf32, #tpu.memory_space<smem>>
      %c92 = arith.constant 92 : index
      %108 = memref.load %arg2[%c92] : memref<98xf32, #tpu.memory_space<smem>>
      %c93 = arith.constant 93 : index
      %109 = memref.load %arg2[%c93] : memref<98xf32, #tpu.memory_space<smem>>
      %c94 = arith.constant 94 : index
      %110 = memref.load %arg2[%c94] : memref<98xf32, #tpu.memory_space<smem>>
      %c95 = arith.constant 95 : index
      %111 = memref.load %arg2[%c95] : memref<98xf32, #tpu.memory_space<smem>>
      %c96 = arith.constant 96 : index
      %112 = memref.load %arg2[%c96] : memref<98xf32, #tpu.memory_space<smem>>
      %c97 = arith.constant 97 : index
      %113 = memref.load %arg2[%c97] : memref<98xf32, #tpu.memory_space<smem>>
      %cst_12 = arith.constant 0.000000e+00 : f32
      %114 = vector.broadcast %cst_12 : f32 to vector<16x128xf32>
      %cst_13 = arith.constant 0.000000e+00 : f32
      %115 = vector.broadcast %cst_13 : f32 to vector<16x128xf32>
      %cst_14 = arith.constant 0.000000e+00 : f32
      %116 = vector.broadcast %cst_14 : f32 to vector<16x128xf32>
      %cst_15 = arith.constant 0.000000e+00 : f32
      %117 = vector.broadcast %cst_15 : f32 to vector<16x128xf32>
      %cst_16 = arith.constant 0.000000e+00 : f32
      %118 = vector.broadcast %cst_16 : f32 to vector<16x128xf32>
      %cst_17 = arith.constant 0.000000e+00 : f32
      %119 = vector.broadcast %cst_17 : f32 to vector<16x128xf32>
      %cst_18 = arith.constant 0.000000e+00 : f32
      %120 = vector.broadcast %cst_18 : f32 to vector<16x128xf32>
      %c0_19 = arith.constant 0 : index
      %c0_20 = arith.constant 0 : index
      %c0_21 = arith.constant 0 : index
      %c0_22 = arith.constant 0 : index
      %121 = vector.load %arg5[%c0_19, %c0_20, %c0_21, %c0_22] : memref<1x2x24x128xf32, #tpu.memory_space<vmem>>, vector<1x1x16x128xf32>
      %122 = vector.shape_cast %121 : vector<1x1x16x128xf32> to vector<16x128xf32>
      %123 = vector.broadcast %16 : f32 to vector<16x128xf32>
      %124 = arith.mulf %123, %122 : vector<16x128xf32>
      %125 = arith.addf %114, %124 : vector<16x128xf32>
      %126 = vector.broadcast %17 : f32 to vector<16x128xf32>
      %127 = arith.mulf %126, %122 : vector<16x128xf32>
      %128 = arith.addf %115, %127 : vector<16x128xf32>
      %129 = vector.broadcast %18 : f32 to vector<16x128xf32>
      %130 = arith.mulf %129, %122 : vector<16x128xf32>
      %131 = arith.addf %116, %130 : vector<16x128xf32>
      %132 = vector.broadcast %19 : f32 to vector<16x128xf32>
      %133 = arith.mulf %132, %122 : vector<16x128xf32>
      %134 = arith.addf %117, %133 : vector<16x128xf32>
      %135 = vector.broadcast %20 : f32 to vector<16x128xf32>
      %136 = arith.mulf %135, %122 : vector<16x128xf32>
      %137 = arith.addf %118, %136 : vector<16x128xf32>
      %138 = vector.broadcast %21 : f32 to vector<16x128xf32>
      %139 = arith.mulf %138, %122 : vector<16x128xf32>
      %140 = arith.addf %119, %139 : vector<16x128xf32>
      %141 = vector.broadcast %22 : f32 to vector<16x128xf32>
      %142 = arith.mulf %141, %122 : vector<16x128xf32>
      %143 = arith.addf %120, %142 : vector<16x128xf32>
      %c0_23 = arith.constant 0 : index
      %c0_24 = arith.constant 0 : index
      %c1_25 = arith.constant 1 : index
      %c0_26 = arith.constant 0 : index
      %144 = vector.load %arg5[%c0_23, %c0_24, %c1_25, %c0_26] : memref<1x2x24x128xf32, #tpu.memory_space<vmem>>, vector<1x1x16x128xf32>
      %145 = vector.shape_cast %144 : vector<1x1x16x128xf32> to vector<16x128xf32>
      %146 = vector.broadcast %23 : f32 to vector<16x128xf32>
      %147 = arith.mulf %146, %145 : vector<16x128xf32>
      %148 = arith.addf %125, %147 : vector<16x128xf32>
      %149 = vector.broadcast %24 : f32 to vector<16x128xf32>
      %150 = arith.mulf %149, %145 : vector<16x128xf32>
      %151 = arith.addf %128, %150 : vector<16x128xf32>
      %152 = vector.broadcast %25 : f32 to vector<16x128xf32>
      %153 = arith.mulf %152, %145 : vector<16x128xf32>
      %154 = arith.addf %131, %153 : vector<16x128xf32>
      %155 = vector.broadcast %26 : f32 to vector<16x128xf32>
      %156 = arith.mulf %155, %145 : vector<16x128xf32>
      %157 = arith.addf %134, %156 : vector<16x128xf32>
      %158 = vector.broadcast %27 : f32 to vector<16x128xf32>
      %159 = arith.mulf %158, %145 : vector<16x128xf32>
      %160 = arith.addf %137, %159 : vector<16x128xf32>
      %161 = vector.broadcast %28 : f32 to vector<16x128xf32>
      %162 = arith.mulf %161, %145 : vector<16x128xf32>
      %163 = arith.addf %140, %162 : vector<16x128xf32>
      %164 = vector.broadcast %29 : f32 to vector<16x128xf32>
      %165 = arith.mulf %164, %145 : vector<16x128xf32>
      %166 = arith.addf %143, %165 : vector<16x128xf32>
      %c0_27 = arith.constant 0 : index
      %c0_28 = arith.constant 0 : index
      %c2_29 = arith.constant 2 : index
      %c0_30 = arith.constant 0 : index
      %167 = vector.load %arg5[%c0_27, %c0_28, %c2_29, %c0_30] : memref<1x2x24x128xf32, #tpu.memory_space<vmem>>, vector<1x1x16x128xf32>
      %168 = vector.shape_cast %167 : vector<1x1x16x128xf32> to vector<16x128xf32>
      %169 = vector.broadcast %30 : f32 to vector<16x128xf32>
      %170 = arith.mulf %169, %168 : vector<16x128xf32>
      %171 = arith.addf %148, %170 : vector<16x128xf32>
      %172 = vector.broadcast %31 : f32 to vector<16x128xf32>
      %173 = arith.mulf %172, %168 : vector<16x128xf32>
      %174 = arith.addf %151, %173 : vector<16x128xf32>
      %175 = vector.broadcast %32 : f32 to vector<16x128xf32>
      %176 = arith.mulf %175, %168 : vector<16x128xf32>
      %177 = arith.addf %154, %176 : vector<16x128xf32>
      %178 = vector.broadcast %33 : f32 to vector<16x128xf32>
      %179 = arith.mulf %178, %168 : vector<16x128xf32>
      %180 = arith.addf %157, %179 : vector<16x128xf32>
      %181 = vector.broadcast %34 : f32 to vector<16x128xf32>
      %182 = arith.mulf %181, %168 : vector<16x128xf32>
      %183 = arith.addf %160, %182 : vector<16x128xf32>
      %184 = vector.broadcast %35 : f32 to vector<16x128xf32>
      %185 = arith.mulf %184, %168 : vector<16x128xf32>
      %186 = arith.addf %163, %185 : vector<16x128xf32>
      %187 = vector.broadcast %36 : f32 to vector<16x128xf32>
      %188 = arith.mulf %187, %168 : vector<16x128xf32>
      %189 = arith.addf %166, %188 : vector<16x128xf32>
      %c0_31 = arith.constant 0 : index
      %c0_32 = arith.constant 0 : index
      %c3_33 = arith.constant 3 : index
      %c0_34 = arith.constant 0 : index
      %190 = vector.load %arg5[%c0_31, %c0_32, %c3_33, %c0_34] : memref<1x2x24x128xf32, #tpu.memory_space<vmem>>, vector<1x1x16x128xf32>
      %191 = vector.shape_cast %190 : vector<1x1x16x128xf32> to vector<16x128xf32>
      %192 = vector.broadcast %37 : f32 to vector<16x128xf32>
      %193 = arith.mulf %192, %191 : vector<16x128xf32>
      %194 = arith.addf %171, %193 : vector<16x128xf32>
      %195 = vector.broadcast %38 : f32 to vector<16x128xf32>
      %196 = arith.mulf %195, %191 : vector<16x128xf32>
      %197 = arith.addf %174, %196 : vector<16x128xf32>
      %198 = vector.broadcast %39 : f32 to vector<16x128xf32>
      %199 = arith.mulf %198, %191 : vector<16x128xf32>
      %200 = arith.addf %177, %199 : vector<16x128xf32>
      %201 = vector.broadcast %40 : f32 to vector<16x128xf32>
      %202 = arith.mulf %201, %191 : vector<16x128xf32>
      %203 = arith.addf %180, %202 : vector<16x128xf32>
      %204 = vector.broadcast %41 : f32 to vector<16x128xf32>
      %205 = arith.mulf %204, %191 : vector<16x128xf32>
      %206 = arith.addf %183, %205 : vector<16x128xf32>
      %207 = vector.broadcast %42 : f32 to vector<16x128xf32>
      %208 = arith.mulf %207, %191 : vector<16x128xf32>
      %209 = arith.addf %186, %208 : vector<16x128xf32>
      %210 = vector.broadcast %43 : f32 to vector<16x128xf32>
      %211 = arith.mulf %210, %191 : vector<16x128xf32>
      %212 = arith.addf %189, %211 : vector<16x128xf32>
      %c0_35 = arith.constant 0 : index
      %c0_36 = arith.constant 0 : index
      %c4_37 = arith.constant 4 : index
      %c0_38 = arith.constant 0 : index
      %213 = vector.load %arg5[%c0_35, %c0_36, %c4_37, %c0_38] : memref<1x2x24x128xf32, #tpu.memory_space<vmem>>, vector<1x1x16x128xf32>
      %214 = vector.shape_cast %213 : vector<1x1x16x128xf32> to vector<16x128xf32>
      %215 = vector.broadcast %44 : f32 to vector<16x128xf32>
      %216 = arith.mulf %215, %214 : vector<16x128xf32>
      %217 = arith.addf %194, %216 : vector<16x128xf32>
      %218 = vector.broadcast %45 : f32 to vector<16x128xf32>
      %219 = arith.mulf %218, %214 : vector<16x128xf32>
      %220 = arith.addf %197, %219 : vector<16x128xf32>
      %221 = vector.broadcast %46 : f32 to vector<16x128xf32>
      %222 = arith.mulf %221, %214 : vector<16x128xf32>
      %223 = arith.addf %200, %222 : vector<16x128xf32>
      %224 = vector.broadcast %47 : f32 to vector<16x128xf32>
      %225 = arith.mulf %224, %214 : vector<16x128xf32>
      %226 = arith.addf %203, %225 : vector<16x128xf32>
      %227 = vector.broadcast %48 : f32 to vector<16x128xf32>
      %228 = arith.mulf %227, %214 : vector<16x128xf32>
      %229 = arith.addf %206, %228 : vector<16x128xf32>
      %230 = vector.broadcast %49 : f32 to vector<16x128xf32>
      %231 = arith.mulf %230, %214 : vector<16x128xf32>
      %232 = arith.addf %209, %231 : vector<16x128xf32>
      %233 = vector.broadcast %50 : f32 to vector<16x128xf32>
      %234 = arith.mulf %233, %214 : vector<16x128xf32>
      %235 = arith.addf %212, %234 : vector<16x128xf32>
      %c0_39 = arith.constant 0 : index
      %c0_40 = arith.constant 0 : index
      %c5_41 = arith.constant 5 : index
      %c0_42 = arith.constant 0 : index
      %236 = vector.load %arg5[%c0_39, %c0_40, %c5_41, %c0_42] : memref<1x2x24x128xf32, #tpu.memory_space<vmem>>, vector<1x1x16x128xf32>
      %237 = vector.shape_cast %236 : vector<1x1x16x128xf32> to vector<16x128xf32>
      %238 = vector.broadcast %51 : f32 to vector<16x128xf32>
      %239 = arith.mulf %238, %237 : vector<16x128xf32>
      %240 = arith.addf %217, %239 : vector<16x128xf32>
      %241 = vector.broadcast %52 : f32 to vector<16x128xf32>
      %242 = arith.mulf %241, %237 : vector<16x128xf32>
      %243 = arith.addf %220, %242 : vector<16x128xf32>
      %244 = vector.broadcast %53 : f32 to vector<16x128xf32>
      %245 = arith.mulf %244, %237 : vector<16x128xf32>
      %246 = arith.addf %223, %245 : vector<16x128xf32>
      %247 = vector.broadcast %54 : f32 to vector<16x128xf32>
      %248 = arith.mulf %247, %237 : vector<16x128xf32>
      %249 = arith.addf %226, %248 : vector<16x128xf32>
      %250 = vector.broadcast %55 : f32 to vector<16x128xf32>
      %251 = arith.mulf %250, %237 : vector<16x128xf32>
      %252 = arith.addf %229, %251 : vector<16x128xf32>
      %253 = vector.broadcast %56 : f32 to vector<16x128xf32>
      %254 = arith.mulf %253, %237 : vector<16x128xf32>
      %255 = arith.addf %232, %254 : vector<16x128xf32>
      %256 = vector.broadcast %57 : f32 to vector<16x128xf32>
      %257 = arith.mulf %256, %237 : vector<16x128xf32>
      %258 = arith.addf %235, %257 : vector<16x128xf32>
      %c0_43 = arith.constant 0 : index
      %c0_44 = arith.constant 0 : index
      %c6_45 = arith.constant 6 : index
      %c0_46 = arith.constant 0 : index
      %259 = vector.load %arg5[%c0_43, %c0_44, %c6_45, %c0_46] : memref<1x2x24x128xf32, #tpu.memory_space<vmem>>, vector<1x1x16x128xf32>
      %260 = vector.shape_cast %259 : vector<1x1x16x128xf32> to vector<16x128xf32>
      %261 = vector.broadcast %58 : f32 to vector<16x128xf32>
      %262 = arith.mulf %261, %260 : vector<16x128xf32>
      %263 = arith.addf %240, %262 : vector<16x128xf32>
      %264 = vector.broadcast %59 : f32 to vector<16x128xf32>
      %265 = arith.mulf %264, %260 : vector<16x128xf32>
      %266 = arith.addf %243, %265 : vector<16x128xf32>
      %267 = vector.broadcast %60 : f32 to vector<16x128xf32>
      %268 = arith.mulf %267, %260 : vector<16x128xf32>
      %269 = arith.addf %246, %268 : vector<16x128xf32>
      %270 = vector.broadcast %61 : f32 to vector<16x128xf32>
      %271 = arith.mulf %270, %260 : vector<16x128xf32>
      %272 = arith.addf %249, %271 : vector<16x128xf32>
      %273 = vector.broadcast %62 : f32 to vector<16x128xf32>
      %274 = arith.mulf %273, %260 : vector<16x128xf32>
      %275 = arith.addf %252, %274 : vector<16x128xf32>
      %276 = vector.broadcast %63 : f32 to vector<16x128xf32>
      %277 = arith.mulf %276, %260 : vector<16x128xf32>
      %278 = arith.addf %255, %277 : vector<16x128xf32>
      %279 = vector.broadcast %64 : f32 to vector<16x128xf32>
      %280 = arith.mulf %279, %260 : vector<16x128xf32>
      %281 = arith.addf %258, %280 : vector<16x128xf32>
      %c0_47 = arith.constant 0 : index
      %c1_48 = arith.constant 1 : index
      %c0_49 = arith.constant 0 : index
      %c0_50 = arith.constant 0 : index
      %282 = vector.load %arg5[%c0_47, %c1_48, %c0_49, %c0_50] : memref<1x2x24x128xf32, #tpu.memory_space<vmem>>, vector<1x1x16x128xf32>
      %283 = vector.shape_cast %282 : vector<1x1x16x128xf32> to vector<16x128xf32>
      %284 = vector.broadcast %65 : f32 to vector<16x128xf32>
      %285 = arith.mulf %284, %283 : vector<16x128xf32>
      %286 = arith.addf %263, %285 : vector<16x128xf32>
      %287 = vector.broadcast %66 : f32 to vector<16x128xf32>
      %288 = arith.mulf %287, %283 : vector<16x128xf32>
      %289 = arith.addf %266, %288 : vector<16x128xf32>
      %290 = vector.broadcast %67 : f32 to vector<16x128xf32>
      %291 = arith.mulf %290, %283 : vector<16x128xf32>
      %292 = arith.addf %269, %291 : vector<16x128xf32>
      %293 = vector.broadcast %68 : f32 to vector<16x128xf32>
      %294 = arith.mulf %293, %283 : vector<16x128xf32>
      %295 = arith.addf %272, %294 : vector<16x128xf32>
      %296 = vector.broadcast %69 : f32 to vector<16x128xf32>
      %297 = arith.mulf %296, %283 : vector<16x128xf32>
      %298 = arith.addf %275, %297 : vector<16x128xf32>
      %299 = vector.broadcast %70 : f32 to vector<16x128xf32>
      %300 = arith.mulf %299, %283 : vector<16x128xf32>
      %301 = arith.addf %278, %300 : vector<16x128xf32>
      %302 = vector.broadcast %71 : f32 to vector<16x128xf32>
      %303 = arith.mulf %302, %283 : vector<16x128xf32>
      %304 = arith.addf %281, %303 : vector<16x128xf32>
      %c0_51 = arith.constant 0 : index
      %c1_52 = arith.constant 1 : index
      %c1_53 = arith.constant 1 : index
      %c0_54 = arith.constant 0 : index
      %305 = vector.load %arg5[%c0_51, %c1_52, %c1_53, %c0_54] : memref<1x2x24x128xf32, #tpu.memory_space<vmem>>, vector<1x1x16x128xf32>
      %306 = vector.shape_cast %305 : vector<1x1x16x128xf32> to vector<16x128xf32>
      %307 = vector.broadcast %72 : f32 to vector<16x128xf32>
      %308 = arith.mulf %307, %306 : vector<16x128xf32>
      %309 = arith.addf %286, %308 : vector<16x128xf32>
      %310 = vector.broadcast %73 : f32 to vector<16x128xf32>
      %311 = arith.mulf %310, %306 : vector<16x128xf32>
      %312 = arith.addf %289, %311 : vector<16x128xf32>
      %313 = vector.broadcast %74 : f32 to vector<16x128xf32>
      %314 = arith.mulf %313, %306 : vector<16x128xf32>
      %315 = arith.addf %292, %314 : vector<16x128xf32>
      %316 = vector.broadcast %75 : f32 to vector<16x128xf32>
      %317 = arith.mulf %316, %306 : vector<16x128xf32>
      %318 = arith.addf %295, %317 : vector<16x128xf32>
      %319 = vector.broadcast %76 : f32 to vector<16x128xf32>
      %320 = arith.mulf %319, %306 : vector<16x128xf32>
      %321 = arith.addf %298, %320 : vector<16x128xf32>
      %322 = vector.broadcast %77 : f32 to vector<16x128xf32>
      %323 = arith.mulf %322, %306 : vector<16x128xf32>
      %324 = arith.addf %301, %323 : vector<16x128xf32>
      %325 = vector.broadcast %78 : f32 to vector<16x128xf32>
      %326 = arith.mulf %325, %306 : vector<16x128xf32>
      %327 = arith.addf %304, %326 : vector<16x128xf32>
      %c0_55 = arith.constant 0 : index
      %c1_56 = arith.constant 1 : index
      %c2_57 = arith.constant 2 : index
      %c0_58 = arith.constant 0 : index
      %328 = vector.load %arg5[%c0_55, %c1_56, %c2_57, %c0_58] : memref<1x2x24x128xf32, #tpu.memory_space<vmem>>, vector<1x1x16x128xf32>
      %329 = vector.shape_cast %328 : vector<1x1x16x128xf32> to vector<16x128xf32>
      %330 = vector.broadcast %79 : f32 to vector<16x128xf32>
      %331 = arith.mulf %330, %329 : vector<16x128xf32>
      %332 = arith.addf %309, %331 : vector<16x128xf32>
      %333 = vector.broadcast %80 : f32 to vector<16x128xf32>
      %334 = arith.mulf %333, %329 : vector<16x128xf32>
      %335 = arith.addf %312, %334 : vector<16x128xf32>
      %336 = vector.broadcast %81 : f32 to vector<16x128xf32>
      %337 = arith.mulf %336, %329 : vector<16x128xf32>
      %338 = arith.addf %315, %337 : vector<16x128xf32>
      %339 = vector.broadcast %82 : f32 to vector<16x128xf32>
      %340 = arith.mulf %339, %329 : vector<16x128xf32>
      %341 = arith.addf %318, %340 : vector<16x128xf32>
      %342 = vector.broadcast %83 : f32 to vector<16x128xf32>
      %343 = arith.mulf %342, %329 : vector<16x128xf32>
      %344 = arith.addf %321, %343 : vector<16x128xf32>
      %345 = vector.broadcast %84 : f32 to vector<16x128xf32>
      %346 = arith.mulf %345, %329 : vector<16x128xf32>
      %347 = arith.addf %324, %346 : vector<16x128xf32>
      %348 = vector.broadcast %85 : f32 to vector<16x128xf32>
      %349 = arith.mulf %348, %329 : vector<16x128xf32>
      %350 = arith.addf %327, %349 : vector<16x128xf32>
      %c0_59 = arith.constant 0 : index
      %c1_60 = arith.constant 1 : index
      %c3_61 = arith.constant 3 : index
      %c0_62 = arith.constant 0 : index
      %351 = vector.load %arg5[%c0_59, %c1_60, %c3_61, %c0_62] : memref<1x2x24x128xf32, #tpu.memory_space<vmem>>, vector<1x1x16x128xf32>
      %352 = vector.shape_cast %351 : vector<1x1x16x128xf32> to vector<16x128xf32>
      %353 = vector.broadcast %86 : f32 to vector<16x128xf32>
      %354 = arith.mulf %353, %352 : vector<16x128xf32>
      %355 = arith.addf %332, %354 : vector<16x128xf32>
      %356 = vector.broadcast %87 : f32 to vector<16x128xf32>
      %357 = arith.mulf %356, %352 : vector<16x128xf32>
      %358 = arith.addf %335, %357 : vector<16x128xf32>
      %359 = vector.broadcast %88 : f32 to vector<16x128xf32>
      %360 = arith.mulf %359, %352 : vector<16x128xf32>
      %361 = arith.addf %338, %360 : vector<16x128xf32>
      %362 = vector.broadcast %89 : f32 to vector<16x128xf32>
      %363 = arith.mulf %362, %352 : vector<16x128xf32>
      %364 = arith.addf %341, %363 : vector<16x128xf32>
      %365 = vector.broadcast %90 : f32 to vector<16x128xf32>
      %366 = arith.mulf %365, %352 : vector<16x128xf32>
      %367 = arith.addf %344, %366 : vector<16x128xf32>
      %368 = vector.broadcast %91 : f32 to vector<16x128xf32>
      %369 = arith.mulf %368, %352 : vector<16x128xf32>
      %370 = arith.addf %347, %369 : vector<16x128xf32>
      %371 = vector.broadcast %92 : f32 to vector<16x128xf32>
      %372 = arith.mulf %371, %352 : vector<16x128xf32>
      %373 = arith.addf %350, %372 : vector<16x128xf32>
      %c0_63 = arith.constant 0 : index
      %c1_64 = arith.constant 1 : index
      %c4_65 = arith.constant 4 : index
      %c0_66 = arith.constant 0 : index
      %374 = vector.load %arg5[%c0_63, %c1_64, %c4_65, %c0_66] : memref<1x2x24x128xf32, #tpu.memory_space<vmem>>, vector<1x1x16x128xf32>
      %375 = vector.shape_cast %374 : vector<1x1x16x128xf32> to vector<16x128xf32>
      %376 = vector.broadcast %93 : f32 to vector<16x128xf32>
      %377 = arith.mulf %376, %375 : vector<16x128xf32>
      %378 = arith.addf %355, %377 : vector<16x128xf32>
      %379 = vector.broadcast %94 : f32 to vector<16x128xf32>
      %380 = arith.mulf %379, %375 : vector<16x128xf32>
      %381 = arith.addf %358, %380 : vector<16x128xf32>
      %382 = vector.broadcast %95 : f32 to vector<16x128xf32>
      %383 = arith.mulf %382, %375 : vector<16x128xf32>
      %384 = arith.addf %361, %383 : vector<16x128xf32>
      %385 = vector.broadcast %96 : f32 to vector<16x128xf32>
      %386 = arith.mulf %385, %375 : vector<16x128xf32>
      %387 = arith.addf %364, %386 : vector<16x128xf32>
      %388 = vector.broadcast %97 : f32 to vector<16x128xf32>
      %389 = arith.mulf %388, %375 : vector<16x128xf32>
      %390 = arith.addf %367, %389 : vector<16x128xf32>
      %391 = vector.broadcast %98 : f32 to vector<16x128xf32>
      %392 = arith.mulf %391, %375 : vector<16x128xf32>
      %393 = arith.addf %370, %392 : vector<16x128xf32>
      %394 = vector.broadcast %99 : f32 to vector<16x128xf32>
      %395 = arith.mulf %394, %375 : vector<16x128xf32>
      %396 = arith.addf %373, %395 : vector<16x128xf32>
      %c0_67 = arith.constant 0 : index
      %c1_68 = arith.constant 1 : index
      %c5_69 = arith.constant 5 : index
      %c0_70 = arith.constant 0 : index
      %397 = vector.load %arg5[%c0_67, %c1_68, %c5_69, %c0_70] : memref<1x2x24x128xf32, #tpu.memory_space<vmem>>, vector<1x1x16x128xf32>
      %398 = vector.shape_cast %397 : vector<1x1x16x128xf32> to vector<16x128xf32>
      %399 = vector.broadcast %100 : f32 to vector<16x128xf32>
      %400 = arith.mulf %399, %398 : vector<16x128xf32>
      %401 = arith.addf %378, %400 : vector<16x128xf32>
      %402 = vector.broadcast %101 : f32 to vector<16x128xf32>
      %403 = arith.mulf %402, %398 : vector<16x128xf32>
      %404 = arith.addf %381, %403 : vector<16x128xf32>
      %405 = vector.broadcast %102 : f32 to vector<16x128xf32>
      %406 = arith.mulf %405, %398 : vector<16x128xf32>
      %407 = arith.addf %384, %406 : vector<16x128xf32>
      %408 = vector.broadcast %103 : f32 to vector<16x128xf32>
      %409 = arith.mulf %408, %398 : vector<16x128xf32>
      %410 = arith.addf %387, %409 : vector<16x128xf32>
      %411 = vector.broadcast %104 : f32 to vector<16x128xf32>
      %412 = arith.mulf %411, %398 : vector<16x128xf32>
      %413 = arith.addf %390, %412 : vector<16x128xf32>
      %414 = vector.broadcast %105 : f32 to vector<16x128xf32>
      %415 = arith.mulf %414, %398 : vector<16x128xf32>
      %416 = arith.addf %393, %415 : vector<16x128xf32>
      %417 = vector.broadcast %106 : f32 to vector<16x128xf32>
      %418 = arith.mulf %417, %398 : vector<16x128xf32>
      %419 = arith.addf %396, %418 : vector<16x128xf32>
      %c0_71 = arith.constant 0 : index
      %c1_72 = arith.constant 1 : index
      %c6_73 = arith.constant 6 : index
      %c0_74 = arith.constant 0 : index
      %420 = vector.load %arg5[%c0_71, %c1_72, %c6_73, %c0_74] : memref<1x2x24x128xf32, #tpu.memory_space<vmem>>, vector<1x1x16x128xf32>
      %421 = vector.shape_cast %420 : vector<1x1x16x128xf32> to vector<16x128xf32>
      %422 = vector.broadcast %107 : f32 to vector<16x128xf32>
      %423 = arith.mulf %422, %421 : vector<16x128xf32>
      %424 = arith.addf %401, %423 : vector<16x128xf32>
      %425 = vector.broadcast %108 : f32 to vector<16x128xf32>
      %426 = arith.mulf %425, %421 : vector<16x128xf32>
      %427 = arith.addf %404, %426 : vector<16x128xf32>
      %428 = vector.broadcast %109 : f32 to vector<16x128xf32>
      %429 = arith.mulf %428, %421 : vector<16x128xf32>
      %430 = arith.addf %407, %429 : vector<16x128xf32>
      %431 = vector.broadcast %110 : f32 to vector<16x128xf32>
      %432 = arith.mulf %431, %421 : vector<16x128xf32>
      %433 = arith.addf %410, %432 : vector<16x128xf32>
      %434 = vector.broadcast %111 : f32 to vector<16x128xf32>
      %435 = arith.mulf %434, %421 : vector<16x128xf32>
      %436 = arith.addf %413, %435 : vector<16x128xf32>
      %437 = vector.broadcast %112 : f32 to vector<16x128xf32>
      %438 = arith.mulf %437, %421 : vector<16x128xf32>
      %439 = arith.addf %416, %438 : vector<16x128xf32>
      %440 = vector.broadcast %113 : f32 to vector<16x128xf32>
      %441 = arith.mulf %440, %421 : vector<16x128xf32>
      %442 = arith.addf %419, %441 : vector<16x128xf32>
      %443 = vector.extract_strided_slice %424 {offsets = [0, 0], sizes = [16, 16], strides = [1, 1]} : vector<16x128xf32> to vector<16x16xf32>
      %444 = vector.extract_strided_slice %427 {offsets = [0, 1], sizes = [16, 16], strides = [1, 1]} : vector<16x128xf32> to vector<16x16xf32>
      %445 = arith.addf %443, %444 : vector<16x16xf32>
      %446 = vector.extract_strided_slice %430 {offsets = [0, 2], sizes = [16, 16], strides = [1, 1]} : vector<16x128xf32> to vector<16x16xf32>
      %447 = arith.addf %445, %446 : vector<16x16xf32>
      %448 = vector.extract_strided_slice %433 {offsets = [0, 3], sizes = [16, 16], strides = [1, 1]} : vector<16x128xf32> to vector<16x16xf32>
      %449 = arith.addf %447, %448 : vector<16x16xf32>
      %450 = vector.extract_strided_slice %436 {offsets = [0, 4], sizes = [16, 16], strides = [1, 1]} : vector<16x128xf32> to vector<16x16xf32>
      %451 = arith.addf %449, %450 : vector<16x16xf32>
      %452 = vector.extract_strided_slice %439 {offsets = [0, 5], sizes = [16, 16], strides = [1, 1]} : vector<16x128xf32> to vector<16x16xf32>
      %453 = arith.addf %451, %452 : vector<16x16xf32>
      %454 = vector.extract_strided_slice %442 {offsets = [0, 6], sizes = [16, 16], strides = [1, 1]} : vector<16x128xf32> to vector<16x16xf32>
      %455 = arith.addf %453, %454 : vector<16x16xf32>
      %456 = arith.negf %455 : vector<16x16xf32>
      %457 = math.exp %456 : vector<16x16xf32>
      %cst_75 = arith.constant 1.000000e+00 : f32
      %458 = vector.broadcast %cst_75 : f32 to vector<16x16xf32>
      %459 = arith.addf %458, %457 : vector<16x16xf32>
      %460 = arith.divf %458, %459 : vector<16x16xf32>
      %c0_76 = arith.constant 0 : index
      %c0_77 = arith.constant 0 : index
      %c0_78 = arith.constant 0 : index
      %c0_79 = arith.constant 0 : index
      %461 = vector.load %arg4[%c0_76, %c0_77, %c0_78, %c0_79] : memref<1x1x16x16xf32, #tpu.memory_space<vmem>>, vector<1x1x16x16xf32>
      %462 = vector.shape_cast %461 : vector<1x1x16x16xf32> to vector<16x16xf32>
      %463 = vector.shape_cast %460 : vector<16x16xf32> to vector<1x1x16x16xf32>
      tpu.vector_store %arg4[%c0_76, %c0_77, %c0_78, %c0_79], %463 {strides = array<i32>} : memref<1x1x16x16xf32, #tpu.memory_space<vmem>>, vector<1x1x16x16xf32>,
    } else {
    }
    return
  }
  func.func @transform_0(%arg0: i32, %arg1: i32) -> i32 {
    %c0_i32 = arith.constant 0 : i32
    %c0_i32_0 = arith.constant 0 : i32
    return %c0_i32 : i32
  }
  func.func @transform_1(%arg0: i32, %arg1: i32) -> (i32, i32, i32, i32) {
    %c0_i32 = arith.constant 0 : i32
    %c0_i32_0 = arith.constant 0 : i32
    %c0_i32_1 = arith.constant 0 : i32
    return %arg0, %arg1, %c0_i32, %c0_i32_0 : i32, i32, i32, i32
  }
  func.func @transform_2(%arg0: i32, %arg1: i32) -> (i32, i32, i32, i32) {
    %c0_i32 = arith.constant 0 : i32
    %c0_i32_0 = arith.constant 0 : i32
    %c0_i32_1 = arith.constant 0 : i32
    %c0_i32_2 = arith.constant 0 : i32
    return %arg0, %c0_i32, %c0_i32_0, %c0_i32_1 : i32, i32, i32, i32
  }
}

</mosaic_0001>

<llo_original>
// kernel: tpu_custom_call.1
$region0: #{tpu_custom_call.1}
  #allocation0 [shape = 'u32[]', space=smem, size = 0x4, offset = 0x4, fixed_abs, tag = 'smem constant byte address 0x4 - core index']
  #allocation1 [shape = 'u32[144,128]{1,0:T(1,128)}', space=vmem, size = 0x12000, scoped, tag = 'internal scratch']
  #allocation2 [shape = 'f32[1,2,24,128]{3,2,1,0:T(8,128)}', space=vmem, size = 0x6000, scoped, tag = 'scratch operand']
  %s0 = inlined_call_operand.hbm [shape: f32[98], index: 0, kind: input, shape index: {}]
  %s1 = inlined_call_operand.hbm [shape: f32[2,4,16,16], index: 1, kind: input, shape index: {}]
  %s2 = inlined_call_operand.hbm [shape: f32[2,1,16,16], index: 2, kind: output, shape index: {}]
  %s3 = sld [smem:[#allocation0]]
  $region65: #{tpu_custom_call.1} parent=0
    _
  %s5 = ssub.s32 1, %s3
  %s6 = scalar_select 0, %s5, %s3
  $region1: #{tpu_custom_call.1} parent=0
    #allocation3 [shape = 'u8[512]{0}', space=smem, size = 0x200, scoped, tag = 'input window, operand 0, single buffered']
    #allocation4 [shape = 's32[2]{0}', space=sflag, size = 0x8, scoped, tag = 'scoped memory for tpu_custom_call.1']
    #allocation5 [shape = 's32[2]{0}', space=sflag, size = 0x8, scoped, tag = 'scoped memory for tpu_custom_call.1']
    #allocation6 [shape = 's32[2]{0}', space=sflag, size = 0x8, scoped, tag = 'scoped memory for tpu_custom_call.1']
    #allocation7 [shape = 'u8[65536]{0}', space=vmem, size = 0x10000, scoped, tag = 'input window, operand 1']
    #allocation8 [shape = 'u8[16384]{0}', space=vmem, size = 0x4000, scoped, tag = 'output window, operand 0']
    %7 = vsyncpa [#allocation6], 0
    %8 = vsyncpa [#allocation4], 0
    %s9 = scalar_lea.sflag [#allocation4], 1
    %10 = vsyncpa %s9, 0
    %11 = vsyncpa [#allocation5], 0
    %s12 = scalar_lea.sflag [#allocation5], 1
    %13 = vsyncpa %s12, 0
    loop: start=0, step=1, limit=4
    $region2: #{tpu_custom_call.1} parent=1 // loop_pre_header
      _
    $region3: #{tpu_custom_call.1} parent=1 // loop_header
      %s15 = sphi 0, %s19
      %p16 = scmp.ge.s32.totalorder %s15, 4
      %s22 = sphi 0, %s34
      %s23 = sphi 0, %s30
      %s24 = sphi 0, %s22
      %s25 = sphi 0, %s23
      %s26 = sphi 0, %s24
      %s27 = sphi 0, %s25
      %s35 = sphi 0, %s35
      %s37 = sphi 0, %s35
      %s38 = sphi 0, %s37
      %s52 = sphi 0, %s38
      %s60 = sphi 0, %s62
      %s63 = sphi 0, %s60
      %s64 = sphi 0, %s63
      %s80 = sphi 0, %s64
      %s86 = sphi 0, %s88
      %s89 = sphi 0, %s86
      %s90 = sphi 0, %s89
      %s106 = sphi 0, %s90
    $region4: #{tpu_custom_call.1} parent=1 // loop_header_branch
      %18 = sbr.rel (%p16) target = $region8
    $region5: #{tpu_custom_call.1} parent=1 // loop_body
      %s20 = ssub.s32 %s15, 1
      %s21 = ssub.s32 %s15, 2
      %s28 = sadd.s32 1, %s23
      %p29 = scmp.ge.s32.totalorder %s28, 1
      %s30 = scalar_select %p29, 0, %s28
      %s31 = sadd.s32 1, %s22
      %s32 = scalar_select %p29, %s31, %s22
      %p33 = scmp.ge.s32.totalorder %s32, 2
      %s34 = scalar_select %p33, 0, %s32
      %s36 = sadd.s32 %s35, 1
      %p39 = scmp.eq.s32.totalorder %s15, 1
      %p40 = scmp.ne.s32.totalorder %s35, %s37
      %p41 = scmp.eq.s32.totalorder %s15, 0
      %p42 = por %p40, %p41
      %p43 = scmp.ne.s32.totalorder %s35, %s37
      %p44 = scmp.eq.s32.totalorder %s20, 1
      %p45 = por %p43, %p44
      %p46 = scmp.ne.s32.totalorder %s37, %s38
      %p47 = scmp.eq.s32.totalorder %s20, 0
      %p48 = por %p46, %p47
      %p49 = scmp.ne.s32.totalorder %s37, %s38
      %p50 = scmp.eq.s32.totalorder %s21, 1
      %p51 = por %p49, %p50
      %p53 = scmp.ne.s32.totalorder %s38, %s52
      %p54 = scmp.eq.s32.totalorder %s21, 0
      %p55 = por %p53, %p54
      %s56 = ssub.s32 %s22, %s34
      %s57 = ssub.s32 %s23, %s30
      %s58 = sor.u32 %s56, %s57
      %p59 = scmp.eq.s32.totalorder %s58, 0
      %s61 = sadd.s32 %s60, 1
      %s62 = scalar_select %p59, %s60, %s61
      %p65 = pneg %p59
      %p66 = scmp.eq.s32.totalorder %s15, 1
      %p67 = por %p65, %p66
      %p68 = scmp.ne.s32.totalorder %s60, %s63
      %p69 = scmp.eq.s32.totalorder %s15, 0
      %p70 = por %p68, %p69
      %p71 = scmp.ne.s32.totalorder %s60, %s63
      %p72 = scmp.eq.s32.totalorder %s20, 1
      %p73 = por %p71, %p72
      %p74 = scmp.ne.s32.totalorder %s63, %s64
      %p75 = scmp.eq.s32.totalorder %s20, 0
      %p76 = por %p74, %p75
      %p77 = scmp.ne.s32.totalorder %s63, %s64
      %p78 = scmp.eq.s32.totalorder %s21, 1
      %p79 = por %p77, %p78
      %p81 = scmp.ne.s32.totalorder %s64, %s80
      %p82 = scmp.eq.s32.totalorder %s21, 0
      %p83 = por %p81, %p82
      %s84 = ssub.s32 %s22, %s34
      %p85 = scmp.eq.s32.totalorder %s84, 0
      %s87 = sadd.s32 %s86, 1
      %s88 = scalar_select %p85, %s86, %s87
      %p91 = pneg %p85
      %p92 = scmp.eq.s32.totalorder %s15, 1
      %p93 = por %p91, %p92
      %p94 = scmp.ne.s32.totalorder %s86, %s89
      %p95 = scmp.eq.s32.totalorder %s15, 0
      %p96 = por %p94, %p95
      %p97 = scmp.ne.s32.totalorder %s86, %s89
      %p98 = scmp.eq.s32.totalorder %s20, 1
      %p99 = por %p97, %p98
      %p100 = scmp.ne.s32.totalorder %s89, %s90
      %p101 = scmp.eq.s32.totalorder %s20, 0
      %p102 = por %p100, %p101
      %p103 = scmp.ne.s32.totalorder %s89, %s90
      %p104 = scmp.eq.s32.totalorder %s21, 1
      %p105 = por %p103, %p104
      %p107 = scmp.ne.s32.totalorder %s90, %s106
      %p108 = scmp.eq.s32.totalorder %s21, 0
      %p109 = por %p107, %p108
      %p110 = scmp.le.s32.totalorder 1, %s15
      %p111 = scmp.lt.s32.totalorder %s15, 3
      %p112 = pnand %p110, %p111
      %p113 = pneg %p112
      // Predicated region
      $region9: #{tpu_custom_call.1} parent=5 // pred_check
        _
      $region10: #{tpu_custom_call.1} parent=5 // pred_check_branch
        %115 = sbr.rel (%p112) target = $region12
      $region11: #{tpu_custom_call.1} parent=5 // pred_region
        %s116 = ssub.s32 %s15, 1
        // Predicated region
        $region13: #{tpu_custom_call.1} parent=11 // pred_check
          %p117 = pneg %p48
        $region14: #{tpu_custom_call.1} parent=11 // pred_check_branch
          %119 = sbr.rel (%p117) target = $region16
        $region15: #{tpu_custom_call.1} parent=11 // pred_region
          %s121 = ssub.s32 16, 16
          %122 = vsyncadd [#allocation6], %s121
          %125 = dma.hbm_to_smem %s0, 16, [#allocation3], [#allocation6]
        $region16: #{tpu_custom_call.1} parent=11 // pred_fallthru
          _
      $region12: #{tpu_custom_call.1} parent=5 // pred_fallthru
        _
      %p126 = scmp.lt.s32.totalorder %s15, 2
      // Predicated region
      $region17: #{tpu_custom_call.1} parent=5 // pred_check
        %p127 = pneg %p126
      $region18: #{tpu_custom_call.1} parent=5 // pred_check_branch
        %129 = sbr.rel (%p127) target = $region20
      $region19: #{tpu_custom_call.1} parent=5 // pred_region
        // Predicated region
        $region21: #{tpu_custom_call.1} parent=19 // pred_check
          %p130 = pneg %p70
        $region22: #{tpu_custom_call.1} parent=19 // pred_check_branch
          %132 = sbr.rel (%p130) target = $region24
        $region23: #{tpu_custom_call.1} parent=19 // pred_region
          %s133 = sand.u32 %s60, 1
          %s134 = scalar_lea.sflag [#allocation4], %s133
          %s135 = sand.u32 %s60, 1
          %s136 = smul.addr %s135, 64
          %s137 = scalar_lea.vmem [#allocation7], %s136
          %s138 = smul.u32 4, %s23
          %s140 = ssub.s32 1024, 1024
          %141 = vsyncadd %s134, %s140
          %s142 = smul.addr %s138, 2
          %s143 = smul.addr %s22, 8
          %s144 = sadd.s32 %s142, %s143
          %s145 = smul.addr %s144, 128
          %s146 = scalar_lea.hbm %s1, %s145
          %s147 = sshll.u32 %s137, 4
          %s148 = int_to_ptr.vmem [resolvable:$true] %s147
          %153 = dma.hbm_to_vmem [thread:$0]  %s146, 1024, %s148, %s134, 128, 128, 8
        $region24: #{tpu_custom_call.1} parent=19 // pred_fallthru
          _
      $region20: #{tpu_custom_call.1} parent=5 // pred_fallthru
        _
      %p154 = scmp.le.s32.totalorder 1, %s15
      %p155 = scmp.lt.s32.totalorder %s15, 3
      %p156 = pnand %p154, %p155
      %p157 = pneg %p156
      // Predicated region
      $region25: #{tpu_custom_call.1} parent=5 // pred_check
        _
      $region26: #{tpu_custom_call.1} parent=5 // pred_check_branch
        %159 = sbr.rel (%p156) target = $region28
      $region27: #{tpu_custom_call.1} parent=5 // pred_region
        %s160 = ssub.s32 %s15, 1
        // Predicated region
        $region29: #{tpu_custom_call.1} parent=27 // pred_check
          %p161 = pneg %p48
        $region30: #{tpu_custom_call.1} parent=27 // pred_check_branch
          %163 = sbr.rel (%p161) target = $region32
        $region31: #{tpu_custom_call.1} parent=27 // pred_region
          %164 = dma.done [#allocation6], 16
        $region32: #{tpu_custom_call.1} parent=27 // pred_fallthru
          _
        %s165 = sand.u32 %s63, 1
        %s166 = scalar_lea.sflag [#allocation4], %s165
        %s167 = sand.u32 %s63, 1
        %s168 = smul.addr %s167, 64
        %s169 = scalar_lea.vmem [#allocation7], %s168
        // Predicated region
        $region33: #{tpu_custom_call.1} parent=27 // pred_check
          %p170 = pneg %p76
        $region34: #{tpu_custom_call.1} parent=27 // pred_check_branch
          %172 = sbr.rel (%p170) target = $region36
        $region35: #{tpu_custom_call.1} parent=27 // pred_region
          %173 = dma.done %s166, 1024
        $region36: #{tpu_custom_call.1} parent=27 // pred_fallthru
          _
        %174 = sfence
        %p175 = pneg %p48
        %p176 = pneg %p45
        %s177 = sand.u32 %s63, 1
        %s178 = scalar_lea.sflag [#allocation4], %s177
        %s179 = sand.u32 %s63, 1
        %s180 = smul.addr %s179, 64
        %s181 = scalar_lea.vmem [#allocation7], %s180
        %p182 = pneg %p76
        %p183 = pneg %p73
        %p184 = pneg %p102
        %p185 = pneg %p99
        %s186 = sand.u32 %s89, 1
        %s187 = scalar_lea.sflag [#allocation5], %s186
        %s188 = sand.u32 %s89, 1
        %s189 = smul.addr %s188, 16
        %s190 = scalar_lea.vmem [#allocation8], %s189
        %s191 = smul.u32 4, %s25
        %p192 = scmp.eq.s32.totalorder %s25, 0
        // Predicated region
        $region37: #{tpu_custom_call.1} parent=27 // pred_check
          %p193 = pneg %p192
        $region38: #{tpu_custom_call.1} parent=27 // pred_check_branch
          %195 = sbr.rel (%p193) target = $region40
        $region39: #{tpu_custom_call.1} parent=27 // pred_region
          %196 = vst [vmem:[#allocation2] sm:$0xff] 0.0
          %197 = vst [vmem:[#allocation2 + $0x8] sm:$0xff] 0.0
          %198 = vst [vmem:[#allocation2 + $0x10] sm:$0xff] 0.0
          %199 = vst [vmem:[#allocation2 + $0x18] sm:$0xff] 0.0
          %200 = vst [vmem:[#allocation2 + $0x20] sm:$0xff] 0.0
          %201 = vst [vmem:[#allocation2 + $0x28] sm:$0xff] 0.0
        $region40: #{tpu_custom_call.1} parent=27 // pred_fallthru
          _
        %v202 = vld [vmem:[%s169] sm:$0xff]
        %v203 = vld [vmem:[%s169 + $0x8] sm:$0xff]
        %v204 = vld [vmem:[%s169 + $0x10] sm:$0xff]
        %v205 = vld [vmem:[%s169 + $0x18] sm:$0xff]
        %v206 = vld [vmem:[%s169 + $0x20] sm:$0xff]
        %v207 = vld [vmem:[%s169 + $0x28] sm:$0xff]
        %v208 = vld [vmem:[%s169 + $0x30] sm:$0xff]
        %v209 = vld [vmem:[%s169 + $0x38] sm:$0xff]
        %vm210 = vcmask 130048
        %v211 = vsel %vm210, %v202, 0.0
        %v212 = vsel %vm210, %v204, 0.0
        %v213 = vadd.f32 %v211, %v212
        %v214 = vsel %vm210, %v206, 0.0
        %v215 = vadd.f32 %v213, %v214
        %v216 = vsel %vm210, %v208, 0.0
        %v217 = vadd.f32 %v215, %v216
        %v218 = vsel %vm210, %v203, 0.0
        %v219 = vsel %vm210, %v205, 0.0
        %v220 = vadd.f32 %v218, %v219
        %v221 = vsel %vm210, %v207, 0.0
        %v222 = vadd.f32 %v220, %v221
        %v223 = vsel %vm210, %v209, 0.0
        %v224 = vadd.f32 %v222, %v223
        %v225 = vsel %vm210, %v202, -inf
        %v226 = vsel %vm210, %v204, -inf
        %v227 = vsel %vm210, %v206, -inf
        %v228 = vmax.f32 %v225, %v227
        %v229 = vsel %vm210, %v208, -inf
        %v230 = vmax.f32 %v226, %v229
        %v231 = vmax.f32 %v228, %v230
        %v232 = vsel %vm210, %v203, -inf
        %v233 = vsel %vm210, %v205, -inf
        %v234 = vsel %vm210, %v207, -inf
        %v235 = vmax.f32 %v232, %v234
        %v236 = vsel %vm210, %v209, -inf
        %v237 = vmax.f32 %v233, %v236
        %v238 = vmax.f32 %v235, %v237
        // Predicated region
        $region41: #{tpu_custom_call.1} parent=27 // pred_check
          %p239 = pneg %p192
        $region42: #{tpu_custom_call.1} parent=27 // pred_check_branch
          %241 = sbr.rel (%p239) target = $region44
        $region43: #{tpu_custom_call.1} parent=27 // pred_region
          %244 = vrot.lane.b32.xlu0 %v217, 3
          %v245 = vpop.permute.xlu0 %244
          %246 = vrot.lane.b32.xlu0 %v224, 3
          %v247 = vpop.permute.xlu0 %246
          %vm250 = vcmask 154648
          %251 = vst.msk [vmem:[#allocation2 + $0x3] sm:$0xff] %vm250, %v245
          %252 = vst.msk [vmem:[#allocation2 + $0xb] sm:$0xff] %vm250, %v247
          %255 = vrot.lane.b32.xlu0 %v231, 3
          %v256 = vpop.permute.xlu0 %255
          %257 = vrot.lane.b32.xlu0 %v238, 3
          %v258 = vpop.permute.xlu0 %257
          %s261 = scalar_lea.vmem [#allocation2], 24
          %262 = vst.msk [vmem:[%s261 + $0x3] sm:$0xff] %vm250, %v256
          %263 = vst.msk [vmem:[%s261 + $0xb] sm:$0xff] %vm250, %v258
        $region44: #{tpu_custom_call.1} parent=27 // pred_fallthru
          _
        %p264 = scmp.gt.s32.totalorder %s25, 0
        // Predicated region
        $region45: #{tpu_custom_call.1} parent=27 // pred_check
          %p265 = pneg %p264
        $region46: #{tpu_custom_call.1} parent=27 // pred_check_branch
          %267 = sbr.rel (%p265) target = $region48
        $region47: #{tpu_custom_call.1} parent=27 // pred_region
          %v268 = vld [vmem:[#allocation2 + $0x3] sm:$0xff]
          %v269 = vld [vmem:[#allocation2 + $0xb] sm:$0xff]
          %272 = vrot.lane.b32.xlu0 %v217, 3
          %v273 = vpop.permute.xlu0 %272
          %274 = vrot.lane.b32.xlu0 %v224, 3
          %v275 = vpop.permute.xlu0 %274
          %v278 = vadd.f32 %v268, %v273
          %v279 = vadd.f32 %v269, %v275
          %vm280 = vcmask 154648
          %281 = vst.msk [vmem:[#allocation2 + $0x3] sm:$0xff] %vm280, %v278
          %282 = vst.msk [vmem:[#allocation2 + $0xb] sm:$0xff] %vm280, %v279
          %s283 = scalar_lea.vmem [#allocation2], 24
          %v284 = vld [vmem:[%s283 + $0x3] sm:$0xff]
          %v285 = vld [vmem:[%s283 + $0xb] sm:$0xff]
          %288 = vrot.lane.b32.xlu0 %v231, 3
          %v289 = vpop.permute.xlu0 %288
          %290 = vrot.lane.b32.xlu0 %v238, 3
          %v291 = vpop.permute.xlu0 %290
          %v294 = vmax.f32 %v284, %v289
          %v295 = vmax.f32 %v285, %v291
          %296 = vst.msk [vmem:[%s283 + $0x3] sm:$0xff] %vm280, %v294
          %297 = vst.msk [vmem:[%s283 + $0xb] sm:$0xff] %vm280, %v295
        $region48: #{tpu_custom_call.1} parent=27 // pred_fallthru
          _
        // Predicated region
        $region49: #{tpu_custom_call.1} parent=27 // pred_check
          %p298 = pneg %p192
        $region50: #{tpu_custom_call.1} parent=27 // pred_check_branch
          %300 = sbr.rel (%p298) target = $region52
        $region51: #{tpu_custom_call.1} parent=27 // pred_region
          %s301 = sld [smem:[#allocation3]]
          %s302 = sld [smem:[#allocation3 + $0x1]]
          %s303 = sld [smem:[#allocation3 + $0x2]]
          %s304 = sld [smem:[#allocation3 + $0x3]]
          %s305 = sld [smem:[#allocation3 + $0x4]]
          %s306 = sld [smem:[#allocation3 + $0x5]]
          %s307 = sld [smem:[#allocation3 + $0x6]]
          %s308 = sld [smem:[#allocation3 + $0x7]]
          %s309 = sld [smem:[#allocation3 + $0x8]]
          %s310 = sld [smem:[#allocation3 + $0x9]]
          %s311 = sld [smem:[#allocation3 + $0xa]]
          %s312 = sld [smem:[#allocation3 + $0xb]]
          %s313 = sld [smem:[#allocation3 + $0xc]]
          %s314 = sld [smem:[#allocation3 + $0xd]]
          %s315 = sld [smem:[#allocation3 + $0xe]]
          %s316 = sld [smem:[#allocation3 + $0xf]]
          %s317 = sld [smem:[#allocation3 + $0x10]]
          %s318 = sld [smem:[#allocation3 + $0x11]]
          %s319 = sld [smem:[#allocation3 + $0x12]]
          %s320 = sld [smem:[#allocation3 + $0x13]]
          %s321 = sld [smem:[#allocation3 + $0x14]]
          %s322 = sld [smem:[#allocation3 + $0x15]]
          %s323 = sld [smem:[#allocation3 + $0x16]]
          %s324 = sld [smem:[#allocation3 + $0x17]]
          %s325 = sld [smem:[#allocation3 + $0x18]]
          %s326 = sld [smem:[#allocation3 + $0x19]]
          %s327 = sld [smem:[#allocation3 + $0x1a]]
          %s328 = sld [smem:[#allocation3 + $0x1b]]
          %s329 = sld [smem:[#allocation3 + $0x1c]]
          %s330 = sld [smem:[#allocation3 + $0x1d]]
          %s331 = sld [smem:[#allocation3 + $0x1e]]
          %s332 = sld [smem:[#allocation3 + $0x1f]]
          %s333 = sld [smem:[#allocation3 + $0x20]]
          %s334 = sld [smem:[#allocation3 + $0x21]]
          %s335 = sld [smem:[#allocation3 + $0x22]]
          %s336 = sld [smem:[#allocation3 + $0x23]]
          %s337 = sld [smem:[#allocation3 + $0x24]]
          %s338 = sld [smem:[#allocation3 + $0x25]]
          %s339 = sld [smem:[#allocation3 + $0x26]]
          %s340 = sld [smem:[#allocation3 + $0x27]]
          %s341 = sld [smem:[#allocation3 + $0x28]]
          %s342 = sld [smem:[#allocation3 + $0x29]]
          %s343 = sld [smem:[#allocation3 + $0x2a]]
          %s344 = sld [smem:[#allocation3 + $0x2b]]
          %s345 = sld [smem:[#allocation3 + $0x2c]]
          %s346 = sld [smem:[#allocation3 + $0x2d]]
          %s347 = sld [smem:[#allocation3 + $0x2e]]
          %s348 = sld [smem:[#allocation3 + $0x2f]]
          %s349 = sld [smem:[#allocation3 + $0x30]]
          %s350 = sld [smem:[#allocation3 + $0x31]]
          %s351 = sld [smem:[#allocation3 + $0x32]]
          %s352 = sld [smem:[#allocation3 + $0x33]]
          %s353 = sld [smem:[#allocation3 + $0x34]]
          %s354 = sld [smem:[#allocation3 + $0x35]]
          %s355 = sld [smem:[#allocation3 + $0x36]]
          %s356 = sld [smem:[#allocation3 + $0x37]]
          %s357 = sld [smem:[#allocation3 + $0x38]]
          %s358 = sld [smem:[#allocation3 + $0x39]]
          %s359 = sld [smem:[#allocation3 + $0x3a]]
          %s360 = sld [smem:[#allocation3 + $0x3b]]
          %s361 = sld [smem:[#allocation3 + $0x3c]]
          %s362 = sld [smem:[#allocation3 + $0x3d]]
          %s363 = sld [smem:[#allocation3 + $0x3e]]
          %s364 = sld [smem:[#allocation3 + $0x3f]]
          %s365 = sld [smem:[#allocation3 + $0x40]]
          %s366 = sld [smem:[#allocation3 + $0x41]]
          %s367 = sld [smem:[#allocation3 + $0x42]]
          %s368 = sld [smem:[#allocation3 + $0x43]]
          %s369 = sld [smem:[#allocation3 + $0x44]]
          %s370 = sld [smem:[#allocation3 + $0x45]]
          %s371 = sld [smem:[#allocation3 + $0x46]]
          %s372 = sld [smem:[#allocation3 + $0x47]]
          %s373 = sld [smem:[#allocation3 + $0x48]]
          %s374 = sld [smem:[#allocation3 + $0x49]]
          %s375 = sld [smem:[#allocation3 + $0x4a]]
          %s376 = sld [smem:[#allocation3 + $0x4b]]
          %s377 = sld [smem:[#allocation3 + $0x4c]]
          %s378 = sld [smem:[#allocation3 + $0x4d]]
          %s379 = sld [smem:[#allocation3 + $0x4e]]
          %s380 = sld [smem:[#allocation3 + $0x4f]]
          %s381 = sld [smem:[#allocation3 + $0x50]]
          %s382 = sld [smem:[#allocation3 + $0x51]]
          %s383 = sld [smem:[#allocation3 + $0x52]]
          %s384 = sld [smem:[#allocation3 + $0x53]]
          %s385 = sld [smem:[#allocation3 + $0x54]]
          %s386 = sld [smem:[#allocation3 + $0x55]]
          %s387 = sld [smem:[#allocation3 + $0x56]]
          %s388 = sld [smem:[#allocation3 + $0x57]]
          %s389 = sld [smem:[#allocation3 + $0x58]]
          %s390 = sld [smem:[#allocation3 + $0x59]]
          %s391 = sld [smem:[#allocation3 + $0x5a]]
          %s392 = sld [smem:[#allocation3 + $0x5b]]
          %s393 = sld [smem:[#allocation3 + $0x5c]]
          %s394 = sld [smem:[#allocation3 + $0x5d]]
          %s395 = sld [smem:[#allocation3 + $0x5e]]
          %s396 = sld [smem:[#allocation3 + $0x5f]]
          %s397 = sld [smem:[#allocation3 + $0x60]]
          %s398 = sld [smem:[#allocation3 + $0x61]]
          %v399 = vld [vmem:[#allocation2] sm:$0xff]
          %v400 = vld [vmem:[#allocation2 + $0x8] sm:$0xff]
          %v401 = vstv %s301
          %v402 = vmul.f32 %v401, %v399
          %v403 = vmul.f32 %v401, %v400
          %v404 = vadd.f32 %v402, 0.0
          %v405 = vadd.f32 %v403, 0.0
          %v406 = vstv %s302
          %v407 = vmul.f32 %v406, %v399
          %v408 = vmul.f32 %v406, %v400
          %v409 = vadd.f32 %v407, 0.0
          %v410 = vadd.f32 %v408, 0.0
          %v411 = vstv %s303
          %v412 = vmul.f32 %v411, %v399
          %v413 = vmul.f32 %v411, %v400
          %v414 = vadd.f32 %v412, 0.0
          %v415 = vadd.f32 %v413, 0.0
          %v416 = vstv %s304
          %v417 = vmul.f32 %v416, %v399
          %v418 = vmul.f32 %v416, %v400
          %v419 = vadd.f32 %v417, 0.0
          %v420 = vadd.f32 %v418, 0.0
          %v421 = vstv %s305
          %v422 = vmul.f32 %v421, %v399
          %v423 = vmul.f32 %v421, %v400
          %v424 = vadd.f32 %v422, 0.0
          %v425 = vadd.f32 %v423, 0.0
          %v426 = vstv %s306
          %v427 = vmul.f32 %v426, %v399
          %v428 = vmul.f32 %v426, %v400
          %v429 = vadd.f32 %v427, 0.0
          %v430 = vadd.f32 %v428, 0.0
          %v431 = vstv %s307
          %v432 = vmul.f32 %v431, %v399
          %v433 = vmul.f32 %v431, %v400
          %v434 = vadd.f32 %v432, 0.0
          %v435 = vadd.f32 %v433, 0.0
          %v436 = vld [vmem:[#allocation2 + $0x1] sm:$0xff]
          %v437 = vld [vmem:[#allocation2 + $0x9] sm:$0xff]
          %v438 = vstv %s308
          %v439 = vmul.f32 %v438, %v436
          %v440 = vmul.f32 %v438, %v437
          %v441 = vadd.f32 %v404, %v439
          %v442 = vadd.f32 %v405, %v440
          %v443 = vstv %s309
          %v444 = vmul.f32 %v443, %v436
          %v445 = vmul.f32 %v443, %v437
          %v446 = vadd.f32 %v409, %v444
          %v447 = vadd.f32 %v410, %v445
          %v448 = vstv %s310
          %v449 = vmul.f32 %v448, %v436
          %v450 = vmul.f32 %v448, %v437
          %v451 = vadd.f32 %v414, %v449
          %v452 = vadd.f32 %v415, %v450
          %v453 = vstv %s311
          %v454 = vmul.f32 %v453, %v436
          %v455 = vmul.f32 %v453, %v437
          %v456 = vadd.f32 %v419, %v454
          %v457 = vadd.f32 %v420, %v455
          %v458 = vstv %s312
          %v459 = vmul.f32 %v458, %v436
          %v460 = vmul.f32 %v458, %v437
          %v461 = vadd.f32 %v424, %v459
          %v462 = vadd.f32 %v425, %v460
          %v463 = vstv %s313
          %v464 = vmul.f32 %v463, %v436
          %v465 = vmul.f32 %v463, %v437
          %v466 = vadd.f32 %v429, %v464
          %v467 = vadd.f32 %v430, %v465
          %v468 = vstv %s314
          %v469 = vmul.f32 %v468, %v436
          %v470 = vmul.f32 %v468, %v437
          %v471 = vadd.f32 %v434, %v469
          %v472 = vadd.f32 %v435, %v470
          %v473 = vld [vmem:[#allocation2 + $0x2] sm:$0xff]
          %v474 = vld [vmem:[#allocation2 + $0xa] sm:$0xff]
          %v475 = vstv %s315
          %v476 = vmul.f32 %v475, %v473
          %v477 = vmul.f32 %v475, %v474
          %v478 = vadd.f32 %v441, %v476
          %v479 = vadd.f32 %v442, %v477
          %v480 = vstv %s316
          %v481 = vmul.f32 %v480, %v473
          %v482 = vmul.f32 %v480, %v474
          %v483 = vadd.f32 %v446, %v481
          %v484 = vadd.f32 %v447, %v482
          %v485 = vstv %s317
          %v486 = vmul.f32 %v485, %v473
          %v487 = vmul.f32 %v485, %v474
          %v488 = vadd.f32 %v451, %v486
          %v489 = vadd.f32 %v452, %v487
          %v490 = vstv %s318
          %v491 = vmul.f32 %v490, %v473
          %v492 = vmul.f32 %v490, %v474
          %v493 = vadd.f32 %v456, %v491
          %v494 = vadd.f32 %v457, %v492
          %v495 = vstv %s319
          %v496 = vmul.f32 %v495, %v473
          %v497 = vmul.f32 %v495, %v474
          %v498 = vadd.f32 %v461, %v496
          %v499 = vadd.f32 %v462, %v497
          %v500 = vstv %s320
          %v501 = vmul.f32 %v500, %v473
          %v502 = vmul.f32 %v500, %v474
          %v503 = vadd.f32 %v466, %v501
          %v504 = vadd.f32 %v467, %v502
          %v505 = vstv %s321
          %v506 = vmul.f32 %v505, %v473
          %v507 = vmul.f32 %v505, %v474
          %v508 = vadd.f32 %v471, %v506
          %v509 = vadd.f32 %v472, %v507
          %v510 = vld [vmem:[#allocation2 + $0x3] sm:$0xff]
          %v511 = vld [vmem:[#allocation2 + $0xb] sm:$0xff]
          %v512 = vstv %s322
          %v513 = vmul.f32 %v512, %v510
          %v514 = vmul.f32 %v512, %v511
          %v515 = vadd.f32 %v478, %v513
          %v516 = vadd.f32 %v479, %v514
          %v517 = vstv %s323
          %v518 = vmul.f32 %v517, %v510
          %v519 = vmul.f32 %v517, %v511
          %v520 = vadd.f32 %v483, %v518
          %v521 = vadd.f32 %v484, %v519
          %v522 = vstv %s324
          %v523 = vmul.f32 %v522, %v510
          %v524 = vmul.f32 %v522, %v511
          %v525 = vadd.f32 %v488, %v523
          %v526 = vadd.f32 %v489, %v524
          %v527 = vstv %s325
          %v528 = vmul.f32 %v527, %v510
          %v529 = vmul.f32 %v527, %v511
          %v530 = vadd.f32 %v493, %v528
          %v531 = vadd.f32 %v494, %v529
          %v532 = vstv %s326
          %v533 = vmul.f32 %v532, %v510
          %v534 = vmul.f32 %v532, %v511
          %v535 = vadd.f32 %v498, %v533
          %v536 = vadd.f32 %v499, %v534
          %v537 = vstv %s327
          %v538 = vmul.f32 %v537, %v510
          %v539 = vmul.f32 %v537, %v511
          %v540 = vadd.f32 %v503, %v538
          %v541 = vadd.f32 %v504, %v539
          %v542 = vstv %s328
          %v543 = vmul.f32 %v542, %v510
          %v544 = vmul.f32 %v542, %v511
          %v545 = vadd.f32 %v508, %v543
          %v546 = vadd.f32 %v509, %v544
          %v547 = vld [vmem:[#allocation2 + $0x4] sm:$0xff]
          %v548 = vld [vmem:[#allocation2 + $0xc] sm:$0xff]
          %v549 = vstv %s329
          %v550 = vmul.f32 %v549, %v547
          %v551 = vmul.f32 %v549, %v548
          %v552 = vadd.f32 %v515, %v550
          %v553 = vadd.f32 %v516, %v551
          %v554 = vstv %s330
          %v555 = vmul.f32 %v554, %v547
          %v556 = vmul.f32 %v554, %v548
          %v557 = vadd.f32 %v520, %v555
          %v558 = vadd.f32 %v521, %v556
          %v559 = vstv %s331
          %v560 = vmul.f32 %v559, %v547
          %v561 = vmul.f32 %v559, %v548
          %v562 = vadd.f32 %v525, %v560
          %v563 = vadd.f32 %v526, %v561
          %v564 = vstv %s332
          %v565 = vmul.f32 %v564, %v547
          %v566 = vmul.f32 %v564, %v548
          %v567 = vadd.f32 %v530, %v565
          %v568 = vadd.f32 %v531, %v566
          %v569 = vstv %s333
          %v570 = vmul.f32 %v569, %v547
          %v571 = vmul.f32 %v569, %v548
          %v572 = vadd.f32 %v535, %v570
          %v573 = vadd.f32 %v536, %v571
          %v574 = vstv %s334
          %v575 = vmul.f32 %v574, %v547
          %v576 = vmul.f32 %v574, %v548
          %v577 = vadd.f32 %v540, %v575
          %v578 = vadd.f32 %v541, %v576
          %v579 = vstv %s335
          %v580 = vmul.f32 %v579, %v547
          %v581 = vmul.f32 %v579, %v548
          %v582 = vadd.f32 %v545, %v580
          %v583 = vadd.f32 %v546, %v581
          %v584 = vld [vmem:[#allocation2 + $0x5] sm:$0xff]
          %v585 = vld [vmem:[#allocation2 + $0xd] sm:$0xff]
          %v586 = vstv %s336
          %v587 = vmul.f32 %v586, %v584
          %v588 = vmul.f32 %v586, %v585
          %v589 = vadd.f32 %v552, %v587
          %v590 = vadd.f32 %v553, %v588
          %v591 = vstv %s337
          %v592 = vmul.f32 %v591, %v584
          %v593 = vmul.f32 %v591, %v585
          %v594 = vadd.f32 %v557, %v592
          %v595 = vadd.f32 %v558, %v593
          %v596 = vstv %s338
          %v597 = vmul.f32 %v596, %v584
          %v598 = vmul.f32 %v596, %v585
          %v599 = vadd.f32 %v562, %v597
          %v600 = vadd.f32 %v563, %v598
          %v601 = vstv %s339
          %v602 = vmul.f32 %v601, %v584
          %v603 = vmul.f32 %v601, %v585
          %v604 = vadd.f32 %v567, %v602
          %v605 = vadd.f32 %v568, %v603
          %v606 = vstv %s340
          %v607 = vmul.f32 %v606, %v584
          %v608 = vmul.f32 %v606, %v585
          %v609 = vadd.f32 %v572, %v607
          %v610 = vadd.f32 %v573, %v608
          %v611 = vstv %s341
          %v612 = vmul.f32 %v611, %v584
          %v613 = vmul.f32 %v611, %v585
          %v614 = vadd.f32 %v577, %v612
          %v615 = vadd.f32 %v578, %v613
          %v616 = vstv %s342
          %v617 = vmul.f32 %v616, %v584
          %v618 = vmul.f32 %v616, %v585
          %v619 = vadd.f32 %v582, %v617
          %v620 = vadd.f32 %v583, %v618
          %v621 = vld [vmem:[#allocation2 + $0x6] sm:$0xff]
          %v622 = vld [vmem:[#allocation2 + $0xe] sm:$0xff]
          %v623 = vstv %s343
          %v624 = vmul.f32 %v623, %v621
          %v625 = vmul.f32 %v623, %v622
          %v626 = vadd.f32 %v589, %v624
          %v627 = vadd.f32 %v590, %v625
          %v628 = vstv %s344
          %v629 = vmul.f32 %v628, %v621
          %v630 = vmul.f32 %v628, %v622
          %v631 = vadd.f32 %v594, %v629
          %v632 = vadd.f32 %v595, %v630
          %v633 = vstv %s345
          %v634 = vmul.f32 %v633, %v621
          %v635 = vmul.f32 %v633, %v622
          %v636 = vadd.f32 %v599, %v634
          %v637 = vadd.f32 %v600, %v635
          %v638 = vstv %s346
          %v639 = vmul.f32 %v638, %v621
          %v640 = vmul.f32 %v638, %v622
          %v641 = vadd.f32 %v604, %v639
          %v642 = vadd.f32 %v605, %v640
          %v643 = vstv %s347
          %v644 = vmul.f32 %v643, %v621
          %v645 = vmul.f32 %v643, %v622
          %v646 = vadd.f32 %v609, %v644
          %v647 = vadd.f32 %v610, %v645
          %v648 = vstv %s348
          %v649 = vmul.f32 %v648, %v621
          %v650 = vmul.f32 %v648, %v622
          %v651 = vadd.f32 %v614, %v649
          %v652 = vadd.f32 %v615, %v650
          %v653 = vstv %s349
          %v654 = vmul.f32 %v653, %v621
          %v655 = vmul.f32 %v653, %v622
          %v656 = vadd.f32 %v619, %v654
          %v657 = vadd.f32 %v620, %v655
          %s658 = scalar_lea.vmem [#allocation2], 24
          %v659 = vld [vmem:[%s658] sm:$0xff]
          %v660 = vld [vmem:[%s658 + $0x8] sm:$0xff]
          %v661 = vstv %s350
          %v662 = vmul.f32 %v661, %v659
          %v663 = vmul.f32 %v661, %v660
          %v664 = vadd.f32 %v626, %v662
          %v665 = vadd.f32 %v627, %v663
          %v666 = vstv %s351
          %v667 = vmul.f32 %v666, %v659
          %v668 = vmul.f32 %v666, %v660
          %v669 = vadd.f32 %v631, %v667
          %v670 = vadd.f32 %v632, %v668
          %v671 = vstv %s352
          %v672 = vmul.f32 %v671, %v659
          %v673 = vmul.f32 %v671, %v660
          %v674 = vadd.f32 %v636, %v672
          %v675 = vadd.f32 %v637, %v673
          %v676 = vstv %s353
          %v677 = vmul.f32 %v676, %v659
          %v678 = vmul.f32 %v676, %v660
          %v679 = vadd.f32 %v641, %v677
          %v680 = vadd.f32 %v642, %v678
          %v681 = vstv %s354
          %v682 = vmul.f32 %v681, %v659
          %v683 = vmul.f32 %v681, %v660
          %v684 = vadd.f32 %v646, %v682
          %v685 = vadd.f32 %v647, %v683
          %v686 = vstv %s355
          %v687 = vmul.f32 %v686, %v659
          %v688 = vmul.f32 %v686, %v660
          %v689 = vadd.f32 %v651, %v687
          %v690 = vadd.f32 %v652, %v688
          %v691 = vstv %s356
          %v692 = vmul.f32 %v691, %v659
          %v693 = vmul.f32 %v691, %v660
          %v694 = vadd.f32 %v656, %v692
          %v695 = vadd.f32 %v657, %v693
          %v696 = vld [vmem:[%s658 + $0x1] sm:$0xff]
          %v697 = vld [vmem:[%s658 + $0x9] sm:$0xff]
          %v698 = vstv %s357
          %v699 = vmul.f32 %v698, %v696
          %v700 = vmul.f32 %v698, %v697
          %v701 = vadd.f32 %v664, %v699
          %v702 = vadd.f32 %v665, %v700
          %v703 = vstv %s358
          %v704 = vmul.f32 %v703, %v696
          %v705 = vmul.f32 %v703, %v697
          %v706 = vadd.f32 %v669, %v704
          %v707 = vadd.f32 %v670, %v705
          %v708 = vstv %s359
          %v709 = vmul.f32 %v708, %v696
          %v710 = vmul.f32 %v708, %v697
          %v711 = vadd.f32 %v674, %v709
          %v712 = vadd.f32 %v675, %v710
          %v713 = vstv %s360
          %v714 = vmul.f32 %v713, %v696
          %v715 = vmul.f32 %v713, %v697
          %v716 = vadd.f32 %v679, %v714
          %v717 = vadd.f32 %v680, %v715
          %v718 = vstv %s361
          %v719 = vmul.f32 %v718, %v696
          %v720 = vmul.f32 %v718, %v697
          %v721 = vadd.f32 %v684, %v719
          %v722 = vadd.f32 %v685, %v720
          %v723 = vstv %s362
          %v724 = vmul.f32 %v723, %v696
          %v725 = vmul.f32 %v723, %v697
          %v726 = vadd.f32 %v689, %v724
          %v727 = vadd.f32 %v690, %v725
          %v728 = vstv %s363
          %v729 = vmul.f32 %v728, %v696
          %v730 = vmul.f32 %v728, %v697
          %v731 = vadd.f32 %v694, %v729
          %v732 = vadd.f32 %v695, %v730
          %v733 = vld [vmem:[%s658 + $0x2] sm:$0xff]
          %v734 = vld [vmem:[%s658 + $0xa] sm:$0xff]
          %v735 = vstv %s364
          %v736 = vmul.f32 %v735, %v733
          %v737 = vmul.f32 %v735, %v734
          %v738 = vadd.f32 %v701, %v736
          %v739 = vadd.f32 %v702, %v737
          %v740 = vstv %s365
          %v741 = vmul.f32 %v740, %v733
          %v742 = vmul.f32 %v740, %v734
          %v743 = vadd.f32 %v706, %v741
          %v744 = vadd.f32 %v707, %v742
          %v745 = vstv %s366
          %v746 = vmul.f32 %v745, %v733
          %v747 = vmul.f32 %v745, %v734
          %v748 = vadd.f32 %v711, %v746
          %v749 = vadd.f32 %v712, %v747
          %v750 = vstv %s367
          %v751 = vmul.f32 %v750, %v733
          %v752 = vmul.f32 %v750, %v734
          %v753 = vadd.f32 %v716, %v751
          %v754 = vadd.f32 %v717, %v752
          %v755 = vstv %s368
          %v756 = vmul.f32 %v755, %v733
          %v757 = vmul.f32 %v755, %v734
          %v758 = vadd.f32 %v721, %v756
          %v759 = vadd.f32 %v722, %v757
          %v760 = vstv %s369
          %v761 = vmul.f32 %v760, %v733
          %v762 = vmul.f32 %v760, %v734
          %v763 = vadd.f32 %v726, %v761
          %v764 = vadd.f32 %v727, %v762
          %v765 = vstv %s370
          %v766 = vmul.f32 %v765, %v733
          %v767 = vmul.f32 %v765, %v734
          %v768 = vadd.f32 %v731, %v766
          %v769 = vadd.f32 %v732, %v767
          %v770 = vld [vmem:[%s658 + $0x3] sm:$0xff]
          %v771 = vld [vmem:[%s658 + $0xb] sm:$0xff]
          %v772 = vstv %s371
          %v773 = vmul.f32 %v772, %v770
          %v774 = vmul.f32 %v772, %v771
          %v775 = vadd.f32 %v738, %v773
          %v776 = vadd.f32 %v739, %v774
          %v777 = vstv %s372
          %v778 = vmul.f32 %v777, %v770
          %v779 = vmul.f32 %v777, %v771
          %v780 = vadd.f32 %v743, %v778
          %v781 = vadd.f32 %v744, %v779
          %v782 = vstv %s373
          %v783 = vmul.f32 %v782, %v770
          %v784 = vmul.f32 %v782, %v771
          %v785 = vadd.f32 %v748, %v783
          %v786 = vadd.f32 %v749, %v784
          %v787 = vstv %s374
          %v788 = vmul.f32 %v787, %v770
          %v789 = vmul.f32 %v787, %v771
          %v790 = vadd.f32 %v753, %v788
          %v791 = vadd.f32 %v754, %v789
          %v792 = vstv %s375
          %v793 = vmul.f32 %v792, %v770
          %v794 = vmul.f32 %v792, %v771
          %v795 = vadd.f32 %v758, %v793
          %v796 = vadd.f32 %v759, %v794
          %v797 = vstv %s376
          %v798 = vmul.f32 %v797, %v770
          %v799 = vmul.f32 %v797, %v771
          %v800 = vadd.f32 %v763, %v798
          %v801 = vadd.f32 %v764, %v799
          %v802 = vstv %s377
          %v803 = vmul.f32 %v802, %v770
          %v804 = vmul.f32 %v802, %v771
          %v805 = vadd.f32 %v768, %v803
          %v806 = vadd.f32 %v769, %v804
          %v807 = vld [vmem:[%s658 + $0x4] sm:$0xff]
          %v808 = vld [vmem:[%s658 + $0xc] sm:$0xff]
          %v809 = vstv %s378
          %v810 = vmul.f32 %v809, %v807
          %v811 = vmul.f32 %v809, %v808
          %v812 = vadd.f32 %v775, %v810
          %v813 = vadd.f32 %v776, %v811
          %v814 = vstv %s379
          %v815 = vmul.f32 %v814, %v807
          %v816 = vmul.f32 %v814, %v808
          %v817 = vadd.f32 %v780, %v815
          %v818 = vadd.f32 %v781, %v816
          %v819 = vstv %s380
          %v820 = vmul.f32 %v819, %v807
          %v821 = vmul.f32 %v819, %v808
          %v822 = vadd.f32 %v785, %v820
          %v823 = vadd.f32 %v786, %v821
          %v824 = vstv %s381
          %v825 = vmul.f32 %v824, %v807
          %v826 = vmul.f32 %v824, %v808
          %v827 = vadd.f32 %v790, %v825
          %v828 = vadd.f32 %v791, %v826
          %v829 = vstv %s382
          %v830 = vmul.f32 %v829, %v807
          %v831 = vmul.f32 %v829, %v808
          %v832 = vadd.f32 %v795, %v830
          %v833 = vadd.f32 %v796, %v831
          %v834 = vstv %s383
          %v835 = vmul.f32 %v834, %v807
          %v836 = vmul.f32 %v834, %v808
          %v837 = vadd.f32 %v800, %v835
          %v838 = vadd.f32 %v801, %v836
          %v839 = vstv %s384
          %v840 = vmul.f32 %v839, %v807
          %v841 = vmul.f32 %v839, %v808
          %v842 = vadd.f32 %v805, %v840
          %v843 = vadd.f32 %v806, %v841
          %v844 = vld [vmem:[%s658 + $0x5] sm:$0xff]
          %v845 = vld [vmem:[%s658 + $0xd] sm:$0xff]
          %v846 = vstv %s385
          %v847 = vmul.f32 %v846, %v844
          %v848 = vmul.f32 %v846, %v845
          %v849 = vadd.f32 %v812, %v847
          %v850 = vadd.f32 %v813, %v848
          %v851 = vstv %s386
          %v852 = vmul.f32 %v851, %v844
          %v853 = vmul.f32 %v851, %v845
          %v854 = vadd.f32 %v817, %v852
          %v855 = vadd.f32 %v818, %v853
          %v856 = vstv %s387
          %v857 = vmul.f32 %v856, %v844
          %v858 = vmul.f32 %v856, %v845
          %v859 = vadd.f32 %v822, %v857
          %v860 = vadd.f32 %v823, %v858
          %v861 = vstv %s388
          %v862 = vmul.f32 %v861, %v844
          %v863 = vmul.f32 %v861, %v845
          %v864 = vadd.f32 %v827, %v862
          %v865 = vadd.f32 %v828, %v863
          %v866 = vstv %s389
          %v867 = vmul.f32 %v866, %v844
          %v868 = vmul.f32 %v866, %v845
          %v869 = vadd.f32 %v832, %v867
          %v870 = vadd.f32 %v833, %v868
          %v871 = vstv %s390
          %v872 = vmul.f32 %v871, %v844
          %v873 = vmul.f32 %v871, %v845
          %v874 = vadd.f32 %v837, %v872
          %v875 = vadd.f32 %v838, %v873
          %v876 = vstv %s391
          %v877 = vmul.f32 %v876, %v844
          %v878 = vmul.f32 %v876, %v845
          %v879 = vadd.f32 %v842, %v877
          %v880 = vadd.f32 %v843, %v878
          %v881 = vld [vmem:[%s658 + $0x6] sm:$0xff]
          %v882 = vld [vmem:[%s658 + $0xe] sm:$0xff]
          %v883 = vstv %s392
          %v884 = vmul.f32 %v883, %v881
          %v885 = vmul.f32 %v883, %v882
          %v886 = vadd.f32 %v849, %v884
          %v887 = vadd.f32 %v850, %v885
          %v888 = vstv %s393
          %v889 = vmul.f32 %v888, %v881
          %v890 = vmul.f32 %v888, %v882
          %v891 = vadd.f32 %v854, %v889
          %v892 = vadd.f32 %v855, %v890
          %v893 = vstv %s394
          %v894 = vmul.f32 %v893, %v881
          %v895 = vmul.f32 %v893, %v882
          %v896 = vadd.f32 %v859, %v894
          %v897 = vadd.f32 %v860, %v895
          %v898 = vstv %s395
          %v899 = vmul.f32 %v898, %v881
          %v900 = vmul.f32 %v898, %v882
          %v901 = vadd.f32 %v864, %v899
          %v902 = vadd.f32 %v865, %v900
          %v903 = vstv %s396
          %v904 = vmul.f32 %v903, %v881
          %v905 = vmul.f32 %v903, %v882
          %v906 = vadd.f32 %v869, %v904
          %v907 = vadd.f32 %v870, %v905
          %v908 = vstv %s397
          %v909 = vmul.f32 %v908, %v881
          %v910 = vmul.f32 %v908, %v882
          %v911 = vadd.f32 %v874, %v909
          %v912 = vadd.f32 %v875, %v910
          %v913 = vstv %s398
          %v914 = vmul.f32 %v913, %v881
          %v915 = vmul.f32 %v913, %v882
          %v916 = vadd.f32 %v879, %v914
          %v917 = vadd.f32 %v880, %v915
          %920 = vrot.lane.b32.xlu0 %v891, 127
          %v921 = vpop.permute.xlu0 %920
          %922 = vrot.lane.b32.xlu0 %v892, 127
          %v923 = vpop.permute.xlu0 %922
          %v926 = vadd.f32 %v886, %v921
          %v927 = vadd.f32 %v887, %v923
          %930 = vrot.lane.b32.xlu0 %v896, 126
          %v931 = vpop.permute.xlu0 %930
          %932 = vrot.lane.b32.xlu0 %v897, 126
          %v933 = vpop.permute.xlu0 %932
          %v936 = vadd.f32 %v926, %v931
          %v937 = vadd.f32 %v927, %v933
          %940 = vrot.lane.b32.xlu0 %v901, 125
          %v941 = vpop.permute.xlu0 %940
          %942 = vrot.lane.b32.xlu0 %v902, 125
          %v943 = vpop.permute.xlu0 %942
          %v946 = vadd.f32 %v936, %v941
          %v947 = vadd.f32 %v937, %v943
          %950 = vrot.lane.b32.xlu0 %v906, 124
          %v951 = vpop.permute.xlu0 %950
          %952 = vrot.lane.b32.xlu0 %v907, 124
          %v953 = vpop.permute.xlu0 %952
          %v956 = vadd.f32 %v946, %v951
          %v957 = vadd.f32 %v947, %v953
          %960 = vrot.lane.b32.xlu0 %v911, 123
          %v961 = vpop.permute.xlu0 %960
          %962 = vrot.lane.b32.xlu0 %v912, 123
          %v963 = vpop.permute.xlu0 %962
          %v966 = vadd.f32 %v956, %v961
          %v967 = vadd.f32 %v957, %v963
          %970 = vrot.lane.b32.xlu0 %v916, 122
          %v971 = vpop.permute.xlu0 %970
          %972 = vrot.lane.b32.xlu0 %v917, 122
          %v973 = vpop.permute.xlu0 %972
          %v976 = vadd.f32 %v966, %v971
          %v977 = vadd.f32 %v967, %v973
          %v978 = vxor.u32 %v976, 2147483648
          %v979 = vxor.u32 %v977, 2147483648
          %v980 = vmul.f32 %v978, 1.442695
          %v981 = vpow.pop %v980
          %v982 = vmul.f32 %v979, 1.442695
          %v983 = vpow.pop %v982
          %v984 = vadd.f32 %v981, 1.0
          %v985 = vadd.f32 %v983, 1.0
          %v986 = vrcp.pop %v984
          %v987 = vmul.f32 1.0, %v986
          %v988 = vrcp.pop %v985
          %v989 = vmul.f32 1.0, %v988
          %990 = vst.msk [vmem:[%s190] sm:$0xff] %vm210, %v987
          %991 = vst.msk [vmem:[%s190 + $0x8] sm:$0xff] %vm210, %v989
        $region52: #{tpu_custom_call.1} parent=27 // pred_fallthru
          _
        %s992 = sand.u32 %s89, 1
        %s993 = scalar_lea.sflag [#allocation5], %s992
        %s994 = sand.u32 %s89, 1
        %s995 = smul.addr %s994, 16
        %s996 = scalar_lea.vmem [#allocation8], %s995
        // Predicated region
        $region53: #{tpu_custom_call.1} parent=27 // pred_check
          %p997 = pneg %p99
        $region54: #{tpu_custom_call.1} parent=27 // pred_check_branch
          %999 = sbr.rel (%p997) target = $region56
        $region55: #{tpu_custom_call.1} parent=27 // pred_region
          %s1001 = ssub.s32 256, 256
          %1002 = vsyncadd %s993, %s1001
          %s1003 = smul.addr %s24, 2
          %s1004 = smul.addr %s1003, 128
          %s1005 = scalar_lea.hbm %s2, %s1004
          %s1006 = sshll.u32 %s996, 4
          %s1007 = int_to_ptr.vmem [resolvable:$true] %s1006
          %1012 = dma.vmem_to_hbm [thread:$0]  %s1007, 256, %s1005, %s993, 128, 128, 8
        $region56: #{tpu_custom_call.1} parent=27 // pred_fallthru
          _
      $region28: #{tpu_custom_call.1} parent=5 // pred_fallthru
        _
      %p1013 = scmp.le.s32.totalorder 2, %s15
      // Predicated region
      $region57: #{tpu_custom_call.1} parent=5 // pred_check
        %p1014 = pneg %p1013
      $region58: #{tpu_custom_call.1} parent=5 // pred_check_branch
        %1016 = sbr.rel (%p1014) target = $region60
      $region59: #{tpu_custom_call.1} parent=5 // pred_region
        %s1017 = ssub.s32 %s15, 2
        // Predicated region
        $region61: #{tpu_custom_call.1} parent=59 // pred_check
          %p1018 = pneg %p105
        $region62: #{tpu_custom_call.1} parent=59 // pred_check_branch
          %1020 = sbr.rel (%p1018) target = $region64
        $region63: #{tpu_custom_call.1} parent=59 // pred_region
          %s1021 = sand.u32 %s90, 1
          %s1022 = scalar_lea.sflag [#allocation5], %s1021
          %s1023 = sand.u32 %s90, 1
          %s1024 = smul.addr %s1023, 16
          %s1025 = scalar_lea.vmem [#allocation8], %s1024
          %1026 = dma.done %s1022, 256
        $region64: #{tpu_custom_call.1} parent=59 // pred_fallthru
          _
      $region60: #{tpu_custom_call.1} parent=5 // pred_fallthru
        _
    $region6: #{tpu_custom_call.1} parent=1 // loop_footer
      %s19 = sadd.s32 1, %s15
    $region7: #{tpu_custom_call.1} parent=1 // loop_footer_branch
      %14 = sbr.rel target = $region3
    $region8: #{tpu_custom_call.1} parent=1 // loop_exit
      _
    %1027 = vsyncpa [#allocation4], 1
    %s1028 = scalar_lea.sflag [#allocation4], 1
    %1029 = vsyncpa %s1028, 1
    %1030 = vsyncpa [#allocation5], 1
    %s1031 = scalar_lea.sflag [#allocation5], 1
    %1032 = vsyncpa %s1031, 1
    %1033 = vsyncpa [#allocation6], 1
    %s1034 = scalar_lea.sflag [#allocation6], 1
    %1035 = vsyncpa %s1034, 1

</llo_original>
